<compile_context>
chip_gen: v6e
topology: v6e:2x2x1
jax: 0.10.0
libtpu: 0.0.40
codegen_flags: <defaults>
</compile_context>

<pallas_src>
import functools

import jax
import jax.numpy as jnp
from jax.experimental import pallas as pl
from jax.experimental.pallas import tpu as pltpu


def _round_up(x, n):
    return -(-x // n) * n


# ----------------------------- Pallas kernel --------------------------------

def dnn_kernel(codes_ref, tt_ref, b0_ref, w1t_ref, b1_ref, w2t_ref, b2_ref,
               o_ref, *, offsets, h_out):
    """One batch tile, feature-major: fused gather + input proj, 2 residual layers.

    codes_ref : (m, bt)        int32 per-attribute LOCAL codes (offsets static)
    tt_ref    : (H_pad, A_pad) bf16  transposed folded table  (concat_j E_j@W0_j)^T
    w*t_ref   : (H_pad, H_pad) bf16  transposed hidden weights (zero padded)
    b*_ref    : (H_pad, 1)     f32   biases (zero padded, column vectors)
    o_ref     : (h_out, bt)    bf16  output rows 0..h_out (lane dense, unmasked vst)
    """
    codes = codes_ref[...]                                     # (m, bt) int32
    m, bt = codes.shape
    a_pad = tt_ref.shape[1]

    # multihot^T: mh[a, n] = 1 iff any attribute of sample n has global code a.
    # Offsets are trace-time Python constants (folded into the comparison).
    iota = jax.lax.broadcasted_iota(jnp.int32, (a_pad, bt), 0)
    hit = iota == (codes[0:1, :] + offsets[0])
    for j in range(1, m):                                      # m static -> unrolled
        hit = hit | (iota == (codes[j:j + 1, :] + offsets[j]))
    mh = hit.astype(jnp.bfloat16)                              # exact 0/1 multi-hot

    # input layer: h0^T = relu(T^T @ mh^T + b0^T)   == relu(sum_j T_j[code_j] + b0)^T
    h = jnp.dot(tt_ref[...], mh, preferred_element_type=jnp.float32) + b0_ref[...]
    h = jnp.maximum(h, 0.0)                                    # (H_pad, bt) f32

    # hidden layer 1 (residual):  h <- relu(W1^T h + b1^T) + h
    z = jnp.dot(w1t_ref[...], h.astype(jnp.bfloat16),
                preferred_element_type=jnp.float32) + b1_ref[...]
    h = jnp.maximum(z, 0.0) + h

    # hidden layer 2 (residual)
    z = jnp.dot(w2t_ref[...], h.astype(jnp.bfloat16),
                preferred_element_type=jnp.float32) + b2_ref[...]
    h = jnp.maximum(z, 0.0) + h

    # store only the useful rows, bf16 (f32 accumulation stays in-kernel)
    o_ref[...] = h[:h_out, :].astype(o_ref.dtype)


# ----------------------- parameter fold / zero-padding ----------------------

def _fold_and_pad_params(params, *, h_pad=128, a_mult=16):
    """Fold W0 into the embedding tables, transpose to feature-major, pad to h_pad."""
    emb = params["embeddings"]
    m = len(emb)
    d = emb[0].shape[1]
    H = params["w0"].shape[1]
    assert H <= h_pad
    arities = [int(e.shape[0]) for e in emb]
    a_total = sum(arities)
    a_pad = _round_up(max(a_total, a_mult), a_mult)
    ph = h_pad - H

    w0p = jnp.pad(params["w0"], ((0, 0), (0, ph)))                 # (m*d, h_pad)
    table = jnp.concatenate(
        [emb[j] @ w0p[j * d:(j + 1) * d, :] for j in range(m)], axis=0)
    table = jnp.pad(table, ((0, a_pad - a_total), (0, 0)))
    tt = table.T.astype(jnp.bfloat16)                              # (h_pad, a_pad)

    b0t = jnp.pad(params["b0"], ((0, 0), (0, ph))).T               # (h_pad, 1) f32
    w1t = jnp.pad(params["w1"], ((0, ph), (0, ph))).T.astype(jnp.bfloat16)
    b1t = jnp.pad(params["b1"], ((0, 0), (0, ph))).T
    w2t = jnp.pad(params["w2"], ((0, ph), (0, ph))).T.astype(jnp.bfloat16)
    b2t = jnp.pad(params["b2"], ((0, 0), (0, ph))).T

    offs, s = [], 0
    for a in arities:
        offs.append(s)
        s += a
    return tt, b0t, w1t, b1t, w2t, b2t, tuple(offs), a_pad


# --------------------------- DeepCatAD forward -------------------------------

def deepcat_ad_forward(inputs, params, *, batch_tile=512, h_pad=128):
    """inputs: (B, n_attributes) int -> H: (B, hidden_dim) f32."""
    tt, b0t, w1t, b1t, w2t, b2t, offsets, a_pad = _fold_and_pad_params(
        params, h_pad=h_pad)
    H = params["w0"].shape[1]
    m = len(params["embeddings"])
    h_out = _round_up(H, 8)                                        # sublane-aligned

    B = inputs.shape[0]
    # Tile selection: lane-dense (multiple of 128), default >= 512 for big B,
    # and keep the grid >= 2 when possible so both v7x TensorCores get work.
    bt = min(batch_tile, _round_up(max(B, 1), 128))
    bt = max(128, (bt // 128) * 128)
    if bt > 128 and -(-B // bt) < 2:
        bt = max(128, ((_round_up(B, 256) // 2) // 128) * 128)
    Bp = _round_up(B, bt)

    codes = jnp.transpose(inputs.astype(jnp.int32))                # (m, B) local codes
    if Bp != B:
        codes = jnp.pad(codes, ((0, 0), (0, Bp - B)))              # value 0 is valid

    kernel = functools.partial(dnn_kernel, offsets=offsets, h_out=h_out)
    const = lambda i: (0, 0)
    out = pl.pallas_call(
        kernel,
        out_shape=jax.ShapeDtypeStruct((h_out, Bp), jnp.bfloat16),
        grid=(Bp // bt,),
        in_specs=[
            pl.BlockSpec((m, bt), lambda i: (0, i)),               # int32 codes tile
            pl.BlockSpec((h_pad, a_pad), const),                   # folded table^T bf16
            pl.BlockSpec((h_pad, 1), const),                       # b0^T
            pl.BlockSpec((h_pad, h_pad), const),                   # w1^T bf16
            pl.BlockSpec((h_pad, 1), const),                       # b1^T
            pl.BlockSpec((h_pad, h_pad), const),                   # w2^T bf16
            pl.BlockSpec((h_pad, 1), const),                       # b2^T
        ],
        out_specs=pl.BlockSpec((h_out, bt), lambda i: (0, i)),     # lane-dense store
        compiler_params=pltpu.CompilerParams(
            dimension_semantics=("parallel",)),
    )(codes, tt, b0t, w1t, b1t, w2t, b2t)

    return jnp.transpose(out[:H, :B]).astype(jnp.float32)


# ------------------------------- references ----------------------------------

def deepcat_ad_reference_f32(inputs, params):
    """Pure-JAX f32 reference of the module forward."""
    emb = params["embeddings"]
    m = len(emb)
    X = jnp.stack([emb[j][inputs[:, j]] for j in range(m)], axis=1)
    x = X.reshape(X.shape[0], -1)
    h = jnp.maximum(x @ params["w0"] + params["b0"], 0.0)
    h = jnp.maximum(h @ params["w1"] + params["b1"], 0.0) + h
    h = jnp.maximum(h @ params["w2"] + params["b2"], 0.0) + h
    return h


def deepcat_ad_reference_bf16(inputs, params, *, h_pad=128):
    """Pure-JAX mirror of the kernel's folded/padded bf16 math (tight check)."""
    tt, b0t, w1t, b1t, w2t, b2t, offsets, _ = _fold_and_pad_params(
        params, h_pad=h_pad)
    H = params["w0"].shape[1]
    m = len(params["embeddings"])
    table = tt.T                                                    # (a_pad, h_pad) bf16
    w1p, w2p = w1t.T, w2t.T
    b0p, b1p, b2p = b0t.T, b1t.T, b2t.T
    codes = inputs.astype(jnp.int32) + jnp.asarray(offsets, jnp.int32)[None, :]
    h = sum(table[codes[:, j]].astype(jnp.float32) for j in range(m)) + b0p
    h = jnp.maximum(h, 0.0)
    z = jnp.dot(h.astype(jnp.bfloat16), w1p, preferred_element_type=jnp.float32) + b1p
    h = jnp.maximum(z, 0.0) + h
    z = jnp.dot(h.astype(jnp.bfloat16), w2p, preferred_element_type=jnp.float32) + b2p
    h = jnp.maximum(z, 0.0) + h
    # kernel stores bf16; wrapper casts back to f32
    return h[:, :H].astype(jnp.bfloat16).astype(jnp.float32)


# --------------------------------- init --------------------------------------

def init_params(key, arities, embedding_dim, hidden_dim):
    """Deterministic parameter init (shapes match the PyTorch module)."""
    m = len(arities)
    keys = jax.random.split(key, m + 6)

    # nn.Embedding default init: N(0, 1), shape (arity_j, embedding_dim)
    embeddings = [
        jax.random.normal(keys[j], (a, embedding_dim), dtype=jnp.float32)
        for j, a in enumerate(arities)
    ]

    def linear(kw, kb, fan_in, fan_out):
        bound = 1.0 / (fan_in ** 0.5)
        w = jax.random.uniform(kw, (fan_in, fan_out), jnp.float32, -bound, bound)
        b = jax.random.uniform(kb, (1, fan_out), jnp.float32, -bound, bound)
        return w, b

    F = m * embedding_dim
    w0, b0 = linear(keys[m + 0], keys[m + 1], F, hidden_dim)
    w1, b1 = linear(keys[m + 2], keys[m + 3], hidden_dim, hidden_dim)
    w2, b2 = linear(keys[m + 4], keys[m + 5], hidden_dim, hidden_dim)
    return dict(embeddings=embeddings, w0=w0, b0=b0, w1=w1, b1=b1, w2=w2, b2=b2)


# ----------------------------------- main ------------------------------------

if __name__ == "__main__":
    arities = (7, 5, 11, 3)        # m = 4 categorical attributes
    embedding_dim = 32
    hidden_dim = 16
    batch = 2000                   # not a tile multiple -> exercises ragged padding
                                   # (pads to 2048, bt=512 -> grid=4, even, >=2)

    key = jax.random.PRNGKey(0)
    kp, kx = jax.random.split(key)
    params = init_params(kp, arities, embedding_dim, hidden_dim)

    # deterministic categorical inputs: (batch, m) int32, input[:, j] < arity_j
    cols = []
    for j, a in enumerate(arities):
        kj = jax.random.fold_in(kx, j)
        cols.append(jax.random.randint(kj, (batch,), 0, a, dtype=jnp.int32))
    inputs = jnp.stack(cols, axis=1)

    fwd = jax.jit(functools.partial(deepcat_ad_forward, batch_tile=512))
    out = jax.block_until_ready(fwd(inputs, params))
    assert out.shape == (batch, hidden_dim)

    # Tight check vs a pure-JAX mirror of the kernel's exact (bf16/padded) math.
    ref_bf16 = deepcat_ad_reference_bf16(inputs, params)
    assert jnp.allclose(out, ref_bf16, atol=1e-2, rtol=1e-2), (
        float(jnp.max(jnp.abs(out - ref_bf16))))

    # Loose sanity check vs the f32 module semantics (bf16-level tolerance).
    ref_f32 = deepcat_ad_reference_f32(inputs, params)
    assert jnp.allclose(out, ref_f32, atol=1e-1, rtol=1e-1), (
        float(jnp.max(jnp.abs(out - ref_f32))))

    print("KERNEL_OK")
</pallas_src>

<mosaic_0001>
module attributes {stable_mosaic.version = 11 : i64} {
  func.func @dnn_kernel(%arg0: i32, %arg1: memref<4x512xi32, #tpu.memory_space<vmem>>, %arg2: memref<128x32xbf16, #tpu.memory_space<vmem>>, %arg3: memref<128x1xf32, #tpu.memory_space<vmem>>, %arg4: memref<128x128xbf16, #tpu.memory_space<vmem>>, %arg5: memref<128x1xf32, #tpu.memory_space<vmem>>, %arg6: memref<128x128xbf16, #tpu.memory_space<vmem>>, %arg7: memref<128x1xf32, #tpu.memory_space<vmem>>, %arg8: memref<16x512xbf16, #tpu.memory_space<vmem>>) attributes {dimension_semantics = [#tpu.dimension_semantics<parallel>], iteration_bounds = array<i64: 4>, scalar_prefetch = 0 : i64, scratch_operands = 0 : i64, tpu.core_type = #tpu.core_type<tc>, window_params = [{transform_indices = @transform_0, window_bounds = array<i64: 4, 512>}, {pipeline_mode = #tpu.pipeline_mode<synchronous>, transform_indices = @transform_1, window_bounds = array<i64: 128, 32>}, {pipeline_mode = #tpu.pipeline_mode<synchronous>, transform_indices = @transform_2, window_bounds = array<i64: 128, 1>}, {pipeline_mode = #tpu.pipeline_mode<synchronous>, transform_indices = @transform_3, window_bounds = array<i64: 128, 128>}, {pipeline_mode = #tpu.pipeline_mode<synchronous>, transform_indices = @transform_4, window_bounds = array<i64: 128, 1>}, {pipeline_mode = #tpu.pipeline_mode<synchronous>, transform_indices = @transform_5, window_bounds = array<i64: 128, 128>}, {pipeline_mode = #tpu.pipeline_mode<synchronous>, transform_indices = @transform_6, window_bounds = array<i64: 128, 1>}, {transform_indices = @transform_7, window_bounds = array<i64: 16, 512>}]} {
    %c0 = arith.constant 0 : index
    %c0_0 = arith.constant 0 : index
    %0 = vector.load %arg1[%c0, %c0_0] : memref<4x512xi32, #tpu.memory_space<vmem>>, vector<4x512xi32>
    %1 = tpu.iota {dimensions = array<i32: 0>} : vector<32x512xi32>
    %2 = vector.extract_strided_slice %0 {offsets = [0, 0], sizes = [1, 512], strides = [1, 1]} : vector<4x512xi32> to vector<1x512xi32>
    %c0_i32 = arith.constant 0 : i32
    %3 = vector.broadcast %c0_i32 : i32 to vector<1x512xi32>
    %4 = arith.addi %2, %3 : vector<1x512xi32>
    %5 = vector.broadcast %4 : vector<1x512xi32> to vector<32x512xi32>
    %6 = arith.cmpi eq, %1, %5 : vector<32x512xi32>
    %7 = vector.extract_strided_slice %0 {offsets = [1, 0], sizes = [1, 512], strides = [1, 1]} : vector<4x512xi32> to vector<1x512xi32>
    %c7_i32 = arith.constant 7 : i32
    %8 = vector.broadcast %c7_i32 : i32 to vector<1x512xi32>
    %9 = arith.addi %7, %8 : vector<1x512xi32>
    %10 = vector.broadcast %9 : vector<1x512xi32> to vector<32x512xi32>
    %11 = arith.cmpi eq, %1, %10 : vector<32x512xi32>
    %12 = arith.ori %6, %11 : vector<32x512xi1>
    %13 = vector.extract_strided_slice %0 {offsets = [2, 0], sizes = [1, 512], strides = [1, 1]} : vector<4x512xi32> to vector<1x512xi32>
    %c12_i32 = arith.constant 12 : i32
    %14 = vector.broadcast %c12_i32 : i32 to vector<1x512xi32>
    %15 = arith.addi %13, %14 : vector<1x512xi32>
    %16 = vector.broadcast %15 : vector<1x512xi32> to vector<32x512xi32>
    %17 = arith.cmpi eq, %1, %16 : vector<32x512xi32>
    %18 = arith.ori %12, %17 : vector<32x512xi1>
    %19 = vector.extract_strided_slice %0 {offsets = [3, 0], sizes = [1, 512], strides = [1, 1]} : vector<4x512xi32> to vector<1x512xi32>
    %c23_i32 = arith.constant 23 : i32
    %20 = vector.broadcast %c23_i32 : i32 to vector<1x512xi32>
    %21 = arith.addi %19, %20 : vector<1x512xi32>
    %22 = vector.broadcast %21 : vector<1x512xi32> to vector<32x512xi32>
    %23 = arith.cmpi eq, %1, %22 : vector<32x512xi32>
    %24 = arith.ori %18, %23 : vector<32x512xi1>
    %25 = arith.extui %24 : vector<32x512xi1> to vector<32x512xi32>
    %26 = arith.sitofp %25 : vector<32x512xi32> to vector<32x512xf32>
    %27 = arith.truncf %26 : vector<32x512xf32> to vector<32x512xbf16>
    %c0_1 = arith.constant 0 : index
    %c0_2 = arith.constant 0 : index
    %28 = vector.load %arg2[%c0_1, %c0_2] : memref<128x32xbf16, #tpu.memory_space<vmem>>, vector<128x32xbf16>
    %cst = arith.constant dense<0.000000e+00> : vector<128x512xf32>
    %29 = tpu.matmul %28, %27, %cst {dimension_numbers = #tpu.dot_dimension_numbers<[1], [0], [0], [1], [0, 0, 1, 1], [], []>} : vector<128x32xbf16>, vector<32x512xbf16>, vector<128x512xf32> -> vector<128x512xf32>
    %c0_3 = arith.constant 0 : index
    %c0_4 = arith.constant 0 : index
    %30 = vector.load %arg3[%c0_3, %c0_4] : memref<128x1xf32, #tpu.memory_space<vmem>>, vector<128x1xf32>
    %31 = vector.broadcast %30 : vector<128x1xf32> to vector<128x512xf32>
    %32 = arith.addf %29, %31 : vector<128x512xf32>
    %cst_5 = arith.constant 0.000000e+00 : f32
    %33 = vector.broadcast %cst_5 : f32 to vector<128x512xf32>
    %34 = arith.maximumf %32, %33 : vector<128x512xf32>
    %c0_6 = arith.constant 0 : index
    %c0_7 = arith.constant 0 : index
    %35 = vector.load %arg4[%c0_6, %c0_7] : memref<128x128xbf16, #tpu.memory_space<vmem>>, vector<128x128xbf16>
    %36 = arith.truncf %34 : vector<128x512xf32> to vector<128x512xbf16>
    %cst_8 = arith.constant dense<0.000000e+00> : vector<128x512xf32>
    %37 = tpu.matmul %35, %36, %cst_8 {dimension_numbers = #tpu.dot_dimension_numbers<[1], [0], [0], [1], [0, 0, 1, 1], [], []>} : vector<128x128xbf16>, vector<128x512xbf16>, vector<128x512xf32> -> vector<128x512xf32>
    %c0_9 = arith.constant 0 : index
    %c0_10 = arith.constant 0 : index
    %38 = vector.load %arg5[%c0_9, %c0_10] : memref<128x1xf32, #tpu.memory_space<vmem>>, vector<128x1xf32>
    %39 = vector.broadcast %38 : vector<128x1xf32> to vector<128x512xf32>
    %40 = arith.addf %37, %39 : vector<128x512xf32>
    %cst_11 = arith.constant 0.000000e+00 : f32
    %41 = vector.broadcast %cst_11 : f32 to vector<128x512xf32>
    %42 = arith.maximumf %40, %41 : vector<128x512xf32>
    %43 = arith.addf %42, %34 : vector<128x512xf32>
    %c0_12 = arith.constant 0 : index
    %c0_13 = arith.constant 0 : index
    %44 = vector.load %arg6[%c0_12, %c0_13] : memref<128x128xbf16, #tpu.memory_space<vmem>>, vector<128x128xbf16>
    %45 = arith.truncf %43 : vector<128x512xf32> to vector<128x512xbf16>
    %cst_14 = arith.constant dense<0.000000e+00> : vector<128x512xf32>
    %46 = tpu.matmul %44, %45, %cst_14 {dimension_numbers = #tpu.dot_dimension_numbers<[1], [0], [0], [1], [0, 0, 1, 1], [], []>} : vector<128x128xbf16>, vector<128x512xbf16>, vector<128x512xf32> -> vector<128x512xf32>
    %c0_15 = arith.constant 0 : index
    %c0_16 = arith.constant 0 : index
    %47 = vector.load %arg7[%c0_15, %c0_16] : memref<128x1xf32, #tpu.memory_space<vmem>>, vector<128x1xf32>
    %48 = vector.broadcast %47 : vector<128x1xf32> to vector<128x512xf32>
    %49 = arith.addf %46, %48 : vector<128x512xf32>
    %cst_17 = arith.constant 0.000000e+00 : f32
    %50 = vector.broadcast %cst_17 : f32 to vector<128x512xf32>
    %51 = arith.maximumf %49, %50 : vector<128x512xf32>
    %52 = arith.addf %51, %43 : vector<128x512xf32>
    %53 = vector.extract_strided_slice %52 {offsets = [0, 0], sizes = [16, 512], strides = [1, 1]} : vector<128x512xf32> to vector<16x512xf32>
    %54 = arith.truncf %53 : vector<16x512xf32> to vector<16x512xbf16>
    %c0_18 = arith.constant 0 : index
    %c0_19 = arith.constant 0 : index
    %55 = vector.load %arg8[%c0_18, %c0_19] : memref<16x512xbf16, #tpu.memory_space<vmem>>, vector<16x512xbf16>
    tpu.vector_store %arg8[%c0_18, %c0_19], %54 {strides = array<i32>} : memref<16x512xbf16, #tpu.memory_space<vmem>>, vector<16x512xbf16>,
    return
  }
  func.func @transform_0(%arg0: i32) -> (i32, i32) {
    %c0_i32 = arith.constant 0 : i32
    %c0_i32_0 = arith.constant 0 : i32
    return %c0_i32, %arg0 : i32, i32
  }
  func.func @transform_1(%arg0: i32) -> (i32, i32) {
    %c0_i32 = arith.constant 0 : i32
    %c0_i32_0 = arith.constant 0 : i32
    %c0_i32_1 = arith.constant 0 : i32
    return %c0_i32, %c0_i32_0 : i32, i32
  }
  func.func @transform_2(%arg0: i32) -> (i32, i32) {
    %c0_i32 = arith.constant 0 : i32
    %c0_i32_0 = arith.constant 0 : i32
    %c0_i32_1 = arith.constant 0 : i32
    return %c0_i32, %c0_i32_0 : i32, i32
  }
  func.func @transform_3(%arg0: i32) -> (i32, i32) {
    %c0_i32 = arith.constant 0 : i32
    %c0_i32_0 = arith.constant 0 : i32
    %c0_i32_1 = arith.constant 0 : i32
    return %c0_i32, %c0_i32_0 : i32, i32
  }
  func.func @transform_4(%arg0: i32) -> (i32, i32) {
    %c0_i32 = arith.constant 0 : i32
    %c0_i32_0 = arith.constant 0 : i32
    %c0_i32_1 = arith.constant 0 : i32
    return %c0_i32, %c0_i32_0 : i32, i32
  }
  func.func @transform_5(%arg0: i32) -> (i32, i32) {
    %c0_i32 = arith.constant 0 : i32
    %c0_i32_0 = arith.constant 0 : i32
    %c0_i32_1 = arith.constant 0 : i32
    return %c0_i32, %c0_i32_0 : i32, i32
  }
  func.func @transform_6(%arg0: i32) -> (i32, i32) {
    %c0_i32 = arith.constant 0 : i32
    %c0_i32_0 = arith.constant 0 : i32
    %c0_i32_1 = arith.constant 0 : i32
    return %c0_i32, %c0_i32_0 : i32, i32
  }
  func.func @transform_7(%arg0: i32) -> (i32, i32) {
    %c0_i32 = arith.constant 0 : i32
    %c0_i32_0 = arith.constant 0 : i32
    return %c0_i32, %arg0 : i32, i32
  }
}

</mosaic_0001>

<llo_original>
// kernel: deepcat_ad_forward.1
$region0: #{deepcat_ad_forward.1}
  #allocation0 [shape = 'u32[]', space=smem, size = 0x4, offset = 0x4, fixed_abs, tag = 'smem constant byte address 0x4 - core index']
  #allocation1 [shape = 'u32[144,128]{1,0:T(1,128)}', space=vmem, size = 0x12000, scoped, tag = 'internal scratch']
  %s0 = inlined_call_operand.vmem [shape: s32[4,2048], index: 0, kind: input, shape index: {}]
  %s1 = inlined_call_operand.vmem [shape: bf16[128,32], index: 1, kind: input, shape index: {}]
  %s2 = inlined_call_operand.vmem [shape: f32[128,1], index: 2, kind: input, shape index: {}]
  %s3 = inlined_call_operand.vmem [shape: bf16[128,128], index: 3, kind: input, shape index: {}]
  %s4 = inlined_call_operand.vmem [shape: f32[128,1], index: 4, kind: input, shape index: {}]
  %s5 = inlined_call_operand.vmem [shape: bf16[128,128], index: 5, kind: input, shape index: {}]
  %s6 = inlined_call_operand.vmem [shape: f32[128,1], index: 6, kind: input, shape index: {}]
  %s7 = inlined_call_operand.vmem [shape: bf16[16,2048], index: 7, kind: output, shape index: {}]
  %s8 = sld [smem:[#allocation0]]
  $region80: #{deepcat_ad_forward.1} parent=0
    _
  %s10 = ssub.s32 1, %s8
  %s11 = scalar_select 0, %s10, %s8
  $region1: #{deepcat_ad_forward.1} parent=0
    #allocation2 [shape = 'u8[32768]{0}', space=vmem, size = 0x8000, scoped, tag = 'output window, operand 0']
    loop: start=0, step=1, limit=6
    $region2: #{deepcat_ad_forward.1} parent=1 // loop_pre_header
      _
    $region3: #{deepcat_ad_forward.1} parent=1 // loop_header
      %s13 = sphi 0, %s17
      %p14 = scmp.ge.s32.totalorder %s13, 6
      %s23 = sphi 0, %s25
      %s26 = sphi 0, %s23
      %s27 = sphi 0, %s26
      %s43 = sphi 0, %s27
      %s47 = sphi 0, %s47
      %s49 = sphi 0, %s47
      %s50 = sphi 0, %s49
      %s64 = sphi 0, %s50
      %s68 = sphi 0, %s68
      %s70 = sphi 0, %s68
      %s71 = sphi 0, %s70
      %s85 = sphi 0, %s71
      %s89 = sphi 0, %s89
      %s91 = sphi 0, %s89
      %s92 = sphi 0, %s91
      %s106 = sphi 0, %s92
      %s110 = sphi 0, %s110
      %s112 = sphi 0, %s110
      %s113 = sphi 0, %s112
      %s127 = sphi 0, %s113
      %s131 = sphi 0, %s131
      %s133 = sphi 0, %s131
      %s134 = sphi 0, %s133
      %s148 = sphi 0, %s134
      %s152 = sphi 0, %s152
      %s154 = sphi 0, %s152
      %s155 = sphi 0, %s154
      %s169 = sphi 0, %s155
      %s175 = sphi 0, %s177
      %s178 = sphi 0, %s175
      %s179 = sphi 0, %s178
      %s195 = sphi 0, %s179
    $region4: #{deepcat_ad_forward.1} parent=1 // loop_header_branch
      %16 = sbr.rel (%p14) target = $region8
    $region5: #{deepcat_ad_forward.1} parent=1 // loop_body
      %s18 = ssub.s32 %s13, 1
      %s19 = ssub.s32 %s13, 2
      %s20 = sadd.s32 %s13, 1
      %s21 = ssub.s32 %s13, %s20
      %p22 = scmp.eq.s32.totalorder %s21, 0
      %s24 = sadd.s32 %s23, 1
      %s25 = scalar_select %p22, %s23, %s24
      %p28 = pneg %p22
      %p29 = scmp.eq.s32.totalorder %s13, 3
      %p30 = por %p28, %p29
      %p31 = scmp.ne.s32.totalorder %s23, %s26
      %p32 = scmp.eq.s32.totalorder %s13, 0
      %p33 = por %p31, %p32
      %p34 = scmp.ne.s32.totalorder %s23, %s26
      %p35 = scmp.eq.s32.totalorder %s18, 3
      %p36 = por %p34, %p35
      %p37 = scmp.ne.s32.totalorder %s26, %s27
      %p38 = scmp.eq.s32.totalorder %s18, 0
      %p39 = por %p37, %p38
      %p40 = scmp.ne.s32.totalorder %s26, %s27
      %p41 = scmp.eq.s32.totalorder %s19, 3
      %p42 = por %p40, %p41
      %p44 = scmp.ne.s32.totalorder %s27, %s43
      %p45 = scmp.eq.s32.totalorder %s19, 0
      %p46 = por %p44, %p45
      %s48 = sadd.s32 %s47, 1
      %p51 = scmp.eq.s32.totalorder %s13, 3
      %p52 = scmp.ne.s32.totalorder %s47, %s49
      %p53 = scmp.eq.s32.totalorder %s13, 0
      %p54 = por %p52, %p53
      %p55 = scmp.ne.s32.totalorder %s47, %s49
      %p56 = scmp.eq.s32.totalorder %s18, 3
      %p57 = por %p55, %p56
      %p58 = scmp.ne.s32.totalorder %s49, %s50
      %p59 = scmp.eq.s32.totalorder %s18, 0
      %p60 = por %p58, %p59
      %p61 = scmp.ne.s32.totalorder %s49, %s50
      %p62 = scmp.eq.s32.totalorder %s19, 3
      %p63 = por %p61, %p62
      %p65 = scmp.ne.s32.totalorder %s50, %s64
      %p66 = scmp.eq.s32.totalorder %s19, 0
      %p67 = por %p65, %p66
      %s69 = sadd.s32 %s68, 1
      %p72 = scmp.eq.s32.totalorder %s13, 3
      %p73 = scmp.ne.s32.totalorder %s68, %s70
      %p74 = scmp.eq.s32.totalorder %s13, 0
      %p75 = por %p73, %p74
      %p76 = scmp.ne.s32.totalorder %s68, %s70
      %p77 = scmp.eq.s32.totalorder %s18, 3
      %p78 = por %p76, %p77
      %p79 = scmp.ne.s32.totalorder %s70, %s71
      %p80 = scmp.eq.s32.totalorder %s18, 0
      %p81 = por %p79, %p80
      %p82 = scmp.ne.s32.totalorder %s70, %s71
      %p83 = scmp.eq.s32.totalorder %s19, 3
      %p84 = por %p82, %p83
      %p86 = scmp.ne.s32.totalorder %s71, %s85
      %p87 = scmp.eq.s32.totalorder %s19, 0
      %p88 = por %p86, %p87
      %s90 = sadd.s32 %s89, 1
      %p93 = scmp.eq.s32.totalorder %s13, 3
      %p94 = scmp.ne.s32.totalorder %s89, %s91
      %p95 = scmp.eq.s32.totalorder %s13, 0
      %p96 = por %p94, %p95
      %p97 = scmp.ne.s32.totalorder %s89, %s91
      %p98 = scmp.eq.s32.totalorder %s18, 3
      %p99 = por %p97, %p98
      %p100 = scmp.ne.s32.totalorder %s91, %s92
      %p101 = scmp.eq.s32.totalorder %s18, 0
      %p102 = por %p100, %p101
      %p103 = scmp.ne.s32.totalorder %s91, %s92
      %p104 = scmp.eq.s32.totalorder %s19, 3
      %p105 = por %p103, %p104
      %p107 = scmp.ne.s32.totalorder %s92, %s106
      %p108 = scmp.eq.s32.totalorder %s19, 0
      %p109 = por %p107, %p108
      %s111 = sadd.s32 %s110, 1
      %p114 = scmp.eq.s32.totalorder %s13, 3
      %p115 = scmp.ne.s32.totalorder %s110, %s112
      %p116 = scmp.eq.s32.totalorder %s13, 0
      %p117 = por %p115, %p116
      %p118 = scmp.ne.s32.totalorder %s110, %s112
      %p119 = scmp.eq.s32.totalorder %s18, 3
      %p120 = por %p118, %p119
      %p121 = scmp.ne.s32.totalorder %s112, %s113
      %p122 = scmp.eq.s32.totalorder %s18, 0
      %p123 = por %p121, %p122
      %p124 = scmp.ne.s32.totalorder %s112, %s113
      %p125 = scmp.eq.s32.totalorder %s19, 3
      %p126 = por %p124, %p125
      %p128 = scmp.ne.s32.totalorder %s113, %s127
      %p129 = scmp.eq.s32.totalorder %s19, 0
      %p130 = por %p128, %p129
      %s132 = sadd.s32 %s131, 1
      %p135 = scmp.eq.s32.totalorder %s13, 3
      %p136 = scmp.ne.s32.totalorder %s131, %s133
      %p137 = scmp.eq.s32.totalorder %s13, 0
      %p138 = por %p136, %p137
      %p139 = scmp.ne.s32.totalorder %s131, %s133
      %p140 = scmp.eq.s32.totalorder %s18, 3
      %p141 = por %p139, %p140
      %p142 = scmp.ne.s32.totalorder %s133, %s134
      %p143 = scmp.eq.s32.totalorder %s18, 0
      %p144 = por %p142, %p143
      %p145 = scmp.ne.s32.totalorder %s133, %s134
      %p146 = scmp.eq.s32.totalorder %s19, 3
      %p147 = por %p145, %p146
      %p149 = scmp.ne.s32.totalorder %s134, %s148
      %p150 = scmp.eq.s32.totalorder %s19, 0
      %p151 = por %p149, %p150
      %s153 = sadd.s32 %s152, 1
      %p156 = scmp.eq.s32.totalorder %s13, 3
      %p157 = scmp.ne.s32.totalorder %s152, %s154
      %p158 = scmp.eq.s32.totalorder %s13, 0
      %p159 = por %p157, %p158
      %p160 = scmp.ne.s32.totalorder %s152, %s154
      %p161 = scmp.eq.s32.totalorder %s18, 3
      %p162 = por %p160, %p161
      %p163 = scmp.ne.s32.totalorder %s154, %s155
      %p164 = scmp.eq.s32.totalorder %s18, 0
      %p165 = por %p163, %p164
      %p166 = scmp.ne.s32.totalorder %s154, %s155
      %p167 = scmp.eq.s32.totalorder %s19, 3
      %p168 = por %p166, %p167
      %p170 = scmp.ne.s32.totalorder %s155, %s169
      %p171 = scmp.eq.s32.totalorder %s19, 0
      %p172 = por %p170, %p171
      %s173 = ssub.s32 %s13, %s20
      %p174 = scmp.eq.s32.totalorder %s173, 0
      %s176 = sadd.s32 %s175, 1
      %s177 = scalar_select %p174, %s175, %s176
      %p180 = pneg %p174
      %p181 = scmp.eq.s32.totalorder %s13, 3
      %p182 = por %p180, %p181
      %p183 = scmp.ne.s32.totalorder %s175, %s178
      %p184 = scmp.eq.s32.totalorder %s13, 0
      %p185 = por %p183, %p184
      %p186 = scmp.ne.s32.totalorder %s175, %s178
      %p187 = scmp.eq.s32.totalorder %s18, 3
      %p188 = por %p186, %p187
      %p189 = scmp.ne.s32.totalorder %s178, %s179
      %p190 = scmp.eq.s32.totalorder %s18, 0
      %p191 = por %p189, %p190
      %p192 = scmp.ne.s32.totalorder %s178, %s179
      %p193 = scmp.eq.s32.totalorder %s19, 3
      %p194 = por %p192, %p193
      %p196 = scmp.ne.s32.totalorder %s179, %s195
      %p197 = scmp.eq.s32.totalorder %s19, 0
      %p198 = por %p196, %p197
      %p199 = scmp.le.s32.totalorder 1, %s13
      %p200 = scmp.lt.s32.totalorder %s13, 5
      %p201 = pnand %p199, %p200
      %p202 = pneg %p201
      // Predicated region
      $region9: #{deepcat_ad_forward.1} parent=5 // pred_check
        _
      $region10: #{deepcat_ad_forward.1} parent=5 // pred_check_branch
        %204 = sbr.rel (%p201) target = $region12
      $region11: #{deepcat_ad_forward.1} parent=5 // pred_region
        %s205 = ssub.s32 %s13, 1
        // Predicated region
        $region13: #{deepcat_ad_forward.1} parent=11 // pred_check
          %p206 = pneg %p60
        $region14: #{deepcat_ad_forward.1} parent=11 // pred_check_branch
          %208 = sbr.rel (%p206) target = $region16
        $region15: #{deepcat_ad_forward.1} parent=11 // pred_region
          _
        $region16: #{deepcat_ad_forward.1} parent=11 // pred_fallthru
          _
        // Predicated region
        $region17: #{deepcat_ad_forward.1} parent=11 // pred_check
          %p209 = pneg %p81
        $region18: #{deepcat_ad_forward.1} parent=11 // pred_check_branch
          %211 = sbr.rel (%p209) target = $region20
        $region19: #{deepcat_ad_forward.1} parent=11 // pred_region
          _
        $region20: #{deepcat_ad_forward.1} parent=11 // pred_fallthru
          _
        // Predicated region
        $region21: #{deepcat_ad_forward.1} parent=11 // pred_check
          %p212 = pneg %p102
        $region22: #{deepcat_ad_forward.1} parent=11 // pred_check_branch
          %214 = sbr.rel (%p212) target = $region24
        $region23: #{deepcat_ad_forward.1} parent=11 // pred_region
          _
        $region24: #{deepcat_ad_forward.1} parent=11 // pred_fallthru
          _
        // Predicated region
        $region25: #{deepcat_ad_forward.1} parent=11 // pred_check
          %p215 = pneg %p123
        $region26: #{deepcat_ad_forward.1} parent=11 // pred_check_branch
          %217 = sbr.rel (%p215) target = $region28
        $region27: #{deepcat_ad_forward.1} parent=11 // pred_region
          _
        $region28: #{deepcat_ad_forward.1} parent=11 // pred_fallthru
          _
        // Predicated region
        $region29: #{deepcat_ad_forward.1} parent=11 // pred_check
          %p218 = pneg %p144
        $region30: #{deepcat_ad_forward.1} parent=11 // pred_check_branch
          %220 = sbr.rel (%p218) target = $region32
        $region31: #{deepcat_ad_forward.1} parent=11 // pred_region
          _
        $region32: #{deepcat_ad_forward.1} parent=11 // pred_fallthru
          _
        // Predicated region
        $region33: #{deepcat_ad_forward.1} parent=11 // pred_check
          %p221 = pneg %p165
        $region34: #{deepcat_ad_forward.1} parent=11 // pred_check_branch
          %223 = sbr.rel (%p221) target = $region36
        $region35: #{deepcat_ad_forward.1} parent=11 // pred_region
          _
        $region36: #{deepcat_ad_forward.1} parent=11 // pred_fallthru
          _
      $region12: #{deepcat_ad_forward.1} parent=5 // pred_fallthru
        _
      %p224 = scmp.lt.s32.totalorder %s13, 4
      // Predicated region
      $region37: #{deepcat_ad_forward.1} parent=5 // pred_check
        %p225 = pneg %p224
      $region38: #{deepcat_ad_forward.1} parent=5 // pred_check_branch
        %227 = sbr.rel (%p225) target = $region40
      $region39: #{deepcat_ad_forward.1} parent=5 // pred_region
        // Predicated region
        $region41: #{deepcat_ad_forward.1} parent=39 // pred_check
          %p228 = pneg %p33
        $region42: #{deepcat_ad_forward.1} parent=39 // pred_check_branch
          %230 = sbr.rel (%p228) target = $region44
        $region43: #{deepcat_ad_forward.1} parent=39 // pred_region
          %s231 = smul.u32 4, %s13
          %p232 = scmp.lt.s32.totalorder %s231, 15
          %s233 = scalar_select %p232, %s231, 15
          %s234 = smul.addr %s233, 4
          %s235 = scalar_lea.vmem %s0, %s234
          %s236 = smul.u32 4, %s13
        $region44: #{deepcat_ad_forward.1} parent=39 // pred_fallthru
          _
      $region40: #{deepcat_ad_forward.1} parent=5 // pred_fallthru
        _
      %p237 = scmp.le.s32.totalorder 1, %s13
      %p238 = scmp.lt.s32.totalorder %s13, 5
      %p239 = pnand %p237, %p238
      %p240 = pneg %p239
      // Predicated region
      $region45: #{deepcat_ad_forward.1} parent=5 // pred_check
        _
      $region46: #{deepcat_ad_forward.1} parent=5 // pred_check_branch
        %242 = sbr.rel (%p239) target = $region48
      $region47: #{deepcat_ad_forward.1} parent=5 // pred_region
        %s243 = ssub.s32 %s13, 1
        %s244 = smul.u32 4, %s18
        %p245 = scmp.lt.s32.totalorder %s244, 15
        %s246 = scalar_select %p245, %s244, 15
        %s247 = smul.addr %s246, 4
        %s248 = scalar_lea.vmem %s0, %s247
        %p249 = pneg %p39
        %p250 = pneg %p36
        %p251 = pneg %p60
        %p252 = pneg %p57
        %p253 = pneg %p81
        %p254 = pneg %p78
        %p255 = pneg %p102
        %p256 = pneg %p99
        %p257 = pneg %p123
        %p258 = pneg %p120
        %p259 = pneg %p144
        %p260 = pneg %p141
        %p261 = pneg %p165
        %p262 = pneg %p162
        %p263 = pneg %p191
        %p264 = pneg %p188
        %s265 = sand.u32 %s178, 1
        %s266 = sand.u32 %s178, 1
        %s267 = smul.addr %s266, 32
        %s268 = scalar_lea.vmem [#allocation2], %s267
        %s269 = smul.u32 4, %s18
        %p270 = scmp.lt.s32.totalorder %s269, 15
        %s271 = scalar_select %p270, %s269, 15
        %s272 = smul.addr %s271, 4
        %s273 = scalar_lea.vmem %s0, %s272
        %s274 = smul.u32 4, %s18
        %s275 = smul.u32 4, %s18
        %v277 = vld [vmem:[%s273] sm:$0xff]
        %v278 = vld [vmem:[%s273 + $0x8] sm:$0xff]
        %v279 = vlaneseq
        %v280 = vshrl.u32 %v279, 7
        %v281 = vadd.s32 %v280, 8
        %v282 = vadd.s32 %v280, 16
        %v283 = vadd.s32 %v280, 24
        %v284 = vlaneseq
        %v285 = vshrl.u32 %v284, 7
        %v286 = vsub.s32 0, %v285
        %v287 = vrot.slane %v277, %v286
        %v288 = vlaneseq
        %v289 = vshrl.u32 %v288, 7
        %v290 = vsub.s32 4, %v289
        %v291 = vrot.slane %v277, %v290
        %v292 = vlaneseq
        %v293 = vshrl.u32 %v292, 7
        %v294 = vsub.s32 0, %v293
        %v295 = vrot.slane %v278, %v294
        %v296 = vlaneseq
        %v297 = vshrl.u32 %v296, 7
        %v298 = vsub.s32 4, %v297
        %v299 = vrot.slane %v278, %v298
        %v300 = vlaneseq
        %v301 = vshrl.u32 %v300, 7
        %v302 = vsub.s32 0, %v301
        %v303 = vrot.slane %v287, %v302
        %v304 = vlaneseq
        %v305 = vshrl.u32 %v304, 7
        %v306 = vsub.s32 0, %v305
        %v307 = vrot.slane %v291, %v306
        %v308 = vlaneseq
        %v309 = vshrl.u32 %v308, 7
        %v310 = vsub.s32 0, %v309
        %v311 = vrot.slane %v295, %v310
        %v312 = vlaneseq
        %v313 = vshrl.u32 %v312, 7
        %v314 = vsub.s32 0, %v313
        %v315 = vrot.slane %v299, %v314
        %vm316 = vcmp.eq.s32.totalorder %v280, %v303
        %vm317 = vcmp.eq.s32.totalorder %v280, %v307
        %vm318 = vcmp.eq.s32.totalorder %v280, %v311
        %vm319 = vcmp.eq.s32.totalorder %v280, %v315
        %vm320 = vcmp.eq.s32.totalorder %v281, %v303
        %vm321 = vcmp.eq.s32.totalorder %v281, %v307
        %vm322 = vcmp.eq.s32.totalorder %v281, %v311
        %vm323 = vcmp.eq.s32.totalorder %v281, %v315
        %vm324 = vcmp.eq.s32.totalorder %v282, %v303
        %vm325 = vcmp.eq.s32.totalorder %v282, %v307
        %vm326 = vcmp.eq.s32.totalorder %v282, %v311
        %vm327 = vcmp.eq.s32.totalorder %v282, %v315
        %vm328 = vcmp.eq.s32.totalorder %v283, %v303
        %vm329 = vcmp.eq.s32.totalorder %v283, %v307
        %vm330 = vcmp.eq.s32.totalorder %v283, %v311
        %vm331 = vcmp.eq.s32.totalorder %v283, %v315
        %v332 = vadd.s32 %v277, 7
        %v333 = vadd.s32 %v278, 7
        %v334 = vlaneseq
        %v335 = vshrl.u32 %v334, 7
        %v336 = vsub.s32 1, %v335
        %v337 = vrot.slane %v332, %v336
        %v338 = vlaneseq
        %v339 = vshrl.u32 %v338, 7
        %v340 = vsub.s32 5, %v339
        %v341 = vrot.slane %v332, %v340
        %v342 = vlaneseq
        %v343 = vshrl.u32 %v342, 7
        %v344 = vsub.s32 1, %v343
        %v345 = vrot.slane %v333, %v344
        %v346 = vlaneseq
        %v347 = vshrl.u32 %v346, 7
        %v348 = vsub.s32 5, %v347
        %v349 = vrot.slane %v333, %v348
        %v350 = vlaneseq
        %v351 = vshrl.u32 %v350, 7
        %v352 = vsub.s32 1, %v351
        %v353 = vrot.slane %v337, %v352
        %v354 = vlaneseq
        %v355 = vshrl.u32 %v354, 7
        %v356 = vsub.s32 1, %v355
        %v357 = vrot.slane %v341, %v356
        %v358 = vlaneseq
        %v359 = vshrl.u32 %v358, 7
        %v360 = vsub.s32 1, %v359
        %v361 = vrot.slane %v345, %v360
        %v362 = vlaneseq
        %v363 = vshrl.u32 %v362, 7
        %v364 = vsub.s32 1, %v363
        %v365 = vrot.slane %v349, %v364
        %vm366 = vcmp.eq.s32.totalorder %v280, %v353
        %vm367 = vcmp.eq.s32.totalorder %v280, %v357
        %vm368 = vcmp.eq.s32.totalorder %v280, %v361
        %vm369 = vcmp.eq.s32.totalorder %v280, %v365
        %vm370 = vcmp.eq.s32.totalorder %v281, %v353
        %vm371 = vcmp.eq.s32.totalorder %v281, %v357
        %vm372 = vcmp.eq.s32.totalorder %v281, %v361
        %vm373 = vcmp.eq.s32.totalorder %v281, %v365
        %vm374 = vcmp.eq.s32.totalorder %v282, %v353
        %vm375 = vcmp.eq.s32.totalorder %v282, %v357
        %vm376 = vcmp.eq.s32.totalorder %v282, %v361
        %vm377 = vcmp.eq.s32.totalorder %v282, %v365
        %vm378 = vcmp.eq.s32.totalorder %v283, %v353
        %vm379 = vcmp.eq.s32.totalorder %v283, %v357
        %vm380 = vcmp.eq.s32.totalorder %v283, %v361
        %vm381 = vcmp.eq.s32.totalorder %v283, %v365
        %vm382 = vmor %vm316, %vm366
        %vm383 = vmor %vm317, %vm367
        %vm384 = vmor %vm318, %vm368
        %vm385 = vmor %vm319, %vm369
        %vm386 = vmor %vm320, %vm370
        %vm387 = vmor %vm321, %vm371
        %vm388 = vmor %vm322, %vm372
        %vm389 = vmor %vm323, %vm373
        %vm390 = vmor %vm324, %vm374
        %vm391 = vmor %vm325, %vm375
        %vm392 = vmor %vm326, %vm376
        %vm393 = vmor %vm327, %vm377
        %vm394 = vmor %vm328, %vm378
        %vm395 = vmor %vm329, %vm379
        %vm396 = vmor %vm330, %vm380
        %vm397 = vmor %vm331, %vm381
        %v398 = vadd.s32 %v277, 12
        %v399 = vadd.s32 %v278, 12
        %v400 = vlaneseq
        %v401 = vshrl.u32 %v400, 7
        %v402 = vsub.s32 2, %v401
        %v403 = vrot.slane %v398, %v402
        %v404 = vlaneseq
        %v405 = vshrl.u32 %v404, 7
        %v406 = vsub.s32 6, %v405
        %v407 = vrot.slane %v398, %v406
        %v408 = vlaneseq
        %v409 = vshrl.u32 %v408, 7
        %v410 = vsub.s32 2, %v409
        %v411 = vrot.slane %v399, %v410
        %v412 = vlaneseq
        %v413 = vshrl.u32 %v412, 7
        %v414 = vsub.s32 6, %v413
        %v415 = vrot.slane %v399, %v414
        %v416 = vlaneseq
        %v417 = vshrl.u32 %v416, 7
        %v418 = vsub.s32 2, %v417
        %v419 = vrot.slane %v403, %v418
        %v420 = vlaneseq
        %v421 = vshrl.u32 %v420, 7
        %v422 = vsub.s32 2, %v421
        %v423 = vrot.slane %v407, %v422
        %v424 = vlaneseq
        %v425 = vshrl.u32 %v424, 7
        %v426 = vsub.s32 2, %v425
        %v427 = vrot.slane %v411, %v426
        %v428 = vlaneseq
        %v429 = vshrl.u32 %v428, 7
        %v430 = vsub.s32 2, %v429
        %v431 = vrot.slane %v415, %v430
        %vm432 = vcmp.eq.s32.totalorder %v280, %v419
        %vm433 = vcmp.eq.s32.totalorder %v280, %v423
        %vm434 = vcmp.eq.s32.totalorder %v280, %v427
        %vm435 = vcmp.eq.s32.totalorder %v280, %v431
        %vm436 = vcmp.eq.s32.totalorder %v281, %v419
        %vm437 = vcmp.eq.s32.totalorder %v281, %v423
        %vm438 = vcmp.eq.s32.totalorder %v281, %v427
        %vm439 = vcmp.eq.s32.totalorder %v281, %v431
        %vm440 = vcmp.eq.s32.totalorder %v282, %v419
        %vm441 = vcmp.eq.s32.totalorder %v282, %v423
        %vm442 = vcmp.eq.s32.totalorder %v282, %v427
        %vm443 = vcmp.eq.s32.totalorder %v282, %v431
        %vm444 = vcmp.eq.s32.totalorder %v283, %v419
        %vm445 = vcmp.eq.s32.totalorder %v283, %v423
        %vm446 = vcmp.eq.s32.totalorder %v283, %v427
        %vm447 = vcmp.eq.s32.totalorder %v283, %v431
        %vm448 = vmor %vm382, %vm432
        %vm449 = vmor %vm383, %vm433
        %vm450 = vmor %vm384, %vm434
        %vm451 = vmor %vm385, %vm435
        %vm452 = vmor %vm386, %vm436
        %vm453 = vmor %vm387, %vm437
        %vm454 = vmor %vm388, %vm438
        %vm455 = vmor %vm389, %vm439
        %vm456 = vmor %vm390, %vm440
        %vm457 = vmor %vm391, %vm441
        %vm458 = vmor %vm392, %vm442
        %vm459 = vmor %vm393, %vm443
        %vm460 = vmor %vm394, %vm444
        %vm461 = vmor %vm395, %vm445
        %vm462 = vmor %vm396, %vm446
        %vm463 = vmor %vm397, %vm447
        %v464 = vadd.s32 %v277, 23
        %v465 = vadd.s32 %v278, 23
        %v466 = vlaneseq
        %v467 = vshrl.u32 %v466, 7
        %v468 = vsub.s32 3, %v467
        %v469 = vrot.slane %v464, %v468
        %v470 = vlaneseq
        %v471 = vshrl.u32 %v470, 7
        %v472 = vsub.s32 7, %v471
        %v473 = vrot.slane %v464, %v472
        %v474 = vlaneseq
        %v475 = vshrl.u32 %v474, 7
        %v476 = vsub.s32 3, %v475
        %v477 = vrot.slane %v465, %v476
        %v478 = vlaneseq
        %v479 = vshrl.u32 %v478, 7
        %v480 = vsub.s32 7, %v479
        %v481 = vrot.slane %v465, %v480
        %v482 = vlaneseq
        %v483 = vshrl.u32 %v482, 7
        %v484 = vsub.s32 3, %v483
        %v485 = vrot.slane %v469, %v484
        %v486 = vlaneseq
        %v487 = vshrl.u32 %v486, 7
        %v488 = vsub.s32 3, %v487
        %v489 = vrot.slane %v473, %v488
        %v490 = vlaneseq
        %v491 = vshrl.u32 %v490, 7
        %v492 = vsub.s32 3, %v491
        %v493 = vrot.slane %v477, %v492
        %v494 = vlaneseq
        %v495 = vshrl.u32 %v494, 7
        %v496 = vsub.s32 3, %v495
        %v497 = vrot.slane %v481, %v496
        %vm498 = vcmp.eq.s32.totalorder %v280, %v485
        %vm499 = vcmp.eq.s32.totalorder %v280, %v489
        %vm500 = vcmp.eq.s32.totalorder %v280, %v493
        %vm501 = vcmp.eq.s32.totalorder %v280, %v497
        %vm502 = vcmp.eq.s32.totalorder %v281, %v485
        %vm503 = vcmp.eq.s32.totalorder %v281, %v489
        %vm504 = vcmp.eq.s32.totalorder %v281, %v493
        %vm505 = vcmp.eq.s32.totalorder %v281, %v497
        %vm506 = vcmp.eq.s32.totalorder %v282, %v485
        %vm507 = vcmp.eq.s32.totalorder %v282, %v489
        %vm508 = vcmp.eq.s32.totalorder %v282, %v493
        %vm509 = vcmp.eq.s32.totalorder %v282, %v497
        %vm510 = vcmp.eq.s32.totalorder %v283, %v485
        %vm511 = vcmp.eq.s32.totalorder %v283, %v489
        %vm512 = vcmp.eq.s32.totalorder %v283, %v493
        %vm513 = vcmp.eq.s32.totalorder %v283, %v497
        %vm514 = vmor %vm448, %vm498
        %vm515 = vmor %vm449, %vm499
        %vm516 = vmor %vm450, %vm500
        %vm517 = vmor %vm451, %vm501
        %vm518 = vmor %vm452, %vm502
        %vm519 = vmor %vm453, %vm503
        %vm520 = vmor %vm454, %vm504
        %vm521 = vmor %vm455, %vm505
        %vm522 = vmor %vm456, %vm506
        %vm523 = vmor %vm457, %vm507
        %vm524 = vmor %vm458, %vm508
        %vm525 = vmor %vm459, %vm509
        %vm526 = vmor %vm460, %vm510
        %vm527 = vmor %vm461, %vm511
        %vm528 = vmor %vm462, %vm512
        %vm529 = vmor %vm463, %vm513
        %v530 = vsel %vm514, 1, 0
        %v531 = vsel %vm515, 1, 0
        %v532 = vsel %vm516, 1, 0
        %v533 = vsel %vm517, 1, 0
        %v534 = vsel %vm518, 1, 0
        %v535 = vsel %vm519, 1, 0
        %v536 = vsel %vm520, 1, 0
        %v537 = vsel %vm521, 1, 0
        %v538 = vsel %vm522, 1, 0
        %v539 = vsel %vm523, 1, 0
        %v540 = vsel %vm524, 1, 0
        %v541 = vsel %vm525, 1, 0
        %v542 = vsel %vm526, 1, 0
        %v543 = vsel %vm527, 1, 0
        %v544 = vsel %vm528, 1, 0
        %v545 = vsel %vm529, 1, 0
        %v546 = vcvt.s32.f32 %v530
        %v547 = vcvt.s32.f32 %v531
        %v548 = vcvt.s32.f32 %v532
        %v549 = vcvt.s32.f32 %v533
        %v550 = vcvt.s32.f32 %v534
        %v551 = vcvt.s32.f32 %v535
        %v552 = vcvt.s32.f32 %v536
        %v553 = vcvt.s32.f32 %v537
        %v554 = vcvt.s32.f32 %v538
        %v555 = vcvt.s32.f32 %v539
        %v556 = vcvt.s32.f32 %v540
        %v557 = vcvt.s32.f32 %v541
        %v558 = vcvt.s32.f32 %v542
        %v559 = vcvt.s32.f32 %v543
        %v560 = vcvt.s32.f32 %v544
        %v561 = vcvt.s32.f32 %v545
        %v562 = vpack.c.bf16 %v550, %v546
        %v563 = vpack.c.bf16 %v551, %v547
        %v564 = vpack.c.bf16 %v552, %v548
        %v565 = vpack.c.bf16 %v553, %v549
        %v566 = vpack.c.bf16 %v558, %v554
        %v567 = vpack.c.bf16 %v559, %v555
        %v568 = vpack.c.bf16 %v560, %v556
        %v569 = vpack.c.bf16 %v561, %v557
        %v570 = vld [vmem:[%s1] sm:$0xf]
        %v571 = vld [vmem:[%s1 + $0x4] sm:$0xf]
        %v572 = vld [vmem:[%s1 + $0x8] sm:$0xf]
        %v573 = vld [vmem:[%s1 + $0xc] sm:$0xf]
        %v574 = vld [vmem:[%s1 + $0x10] sm:$0xf]
        %v575 = vld [vmem:[%s1 + $0x14] sm:$0xf]
        %v576 = vld [vmem:[%s1 + $0x18] sm:$0xf]
        %v577 = vld [vmem:[%s1 + $0x1c] sm:$0xf]
        %v578 = vld [vmem:[%s1 + $0x20] sm:$0xf]
        %v579 = vld [vmem:[%s1 + $0x24] sm:$0xf]
        %v580 = vld [vmem:[%s1 + $0x28] sm:$0xf]
        %v581 = vld [vmem:[%s1 + $0x2c] sm:$0xf]
        %v582 = vld [vmem:[%s1 + $0x30] sm:$0xf]
        %v583 = vld [vmem:[%s1 + $0x34] sm:$0xf]
        %v584 = vld [vmem:[%s1 + $0x38] sm:$0xf]
        %v585 = vld [vmem:[%s1 + $0x3c] sm:$0xf]
        %v586 = vld [vmem:[%s2] sm:$0xff]
        %v587 = vld [vmem:[%s2 + $0x8] sm:$0xff]
        %v588 = vld [vmem:[%s2 + $0x10] sm:$0xff]
        %v589 = vld [vmem:[%s2 + $0x18] sm:$0xff]
        %v590 = vld [vmem:[%s2 + $0x20] sm:$0xff]
        %v591 = vld [vmem:[%s2 + $0x28] sm:$0xff]
        %v592 = vld [vmem:[%s2 + $0x30] sm:$0xff]
        %v593 = vld [vmem:[%s2 + $0x38] sm:$0xff]
        %v594 = vld [vmem:[%s2 + $0x40] sm:$0xff]
        %v595 = vld [vmem:[%s2 + $0x48] sm:$0xff]
        %v596 = vld [vmem:[%s2 + $0x50] sm:$0xff]
        %v597 = vld [vmem:[%s2 + $0x58] sm:$0xff]
        %v598 = vld [vmem:[%s2 + $0x60] sm:$0xff]
        %v599 = vld [vmem:[%s2 + $0x68] sm:$0xff]
        %v600 = vld [vmem:[%s2 + $0x70] sm:$0xff]
        %v601 = vld [vmem:[%s2 + $0x78] sm:$0xff]
        %603 = vset.pattern.permute.xlu0 0
        %604 = vperm.xlu0 %603, %v586
        %v605 = vpop.permute.xlu0 %604
        %608 = vset.pattern.permute.xlu0 0
        %609 = vperm.xlu0 %608, %v587
        %v610 = vpop.permute.xlu0 %609
        %613 = vset.pattern.permute.xlu0 0
        %614 = vperm.xlu0 %613, %v588
        %v615 = vpop.permute.xlu0 %614
        %618 = vset.pattern.permute.xlu0 0
        %619 = vperm.xlu0 %618, %v589
        %v620 = vpop.permute.xlu0 %619
        %623 = vset.pattern.permute.xlu0 0
        %624 = vperm.xlu0 %623, %v590
        %v625 = vpop.permute.xlu0 %624
        %628 = vset.pattern.permute.xlu0 0
        %629 = vperm.xlu0 %628, %v591
        %v630 = vpop.permute.xlu0 %629
        %633 = vset.pattern.permute.xlu0 0
        %634 = vperm.xlu0 %633, %v592
        %v635 = vpop.permute.xlu0 %634
        %638 = vset.pattern.permute.xlu0 0
        %639 = vperm.xlu0 %638, %v593
        %v640 = vpop.permute.xlu0 %639
        %643 = vset.pattern.permute.xlu0 0
        %644 = vperm.xlu0 %643, %v594
        %v645 = vpop.permute.xlu0 %644
        %648 = vset.pattern.permute.xlu0 0
        %649 = vperm.xlu0 %648, %v595
        %v650 = vpop.permute.xlu0 %649
        %653 = vset.pattern.permute.xlu0 0
        %654 = vperm.xlu0 %653, %v596
        %v655 = vpop.permute.xlu0 %654
        %658 = vset.pattern.permute.xlu0 0
        %659 = vperm.xlu0 %658, %v597
        %v660 = vpop.permute.xlu0 %659
        %663 = vset.pattern.permute.xlu0 0
        %664 = vperm.xlu0 %663, %v598
        %v665 = vpop.permute.xlu0 %664
        %668 = vset.pattern.permute.xlu0 0
        %669 = vperm.xlu0 %668, %v599
        %v670 = vpop.permute.xlu0 %669
        %673 = vset.pattern.permute.xlu0 0
        %674 = vperm.xlu0 %673, %v600
        %v675 = vpop.permute.xlu0 %674
        %678 = vset.pattern.permute.xlu0 0
        %679 = vperm.xlu0 %678, %v601
        %v680 = vpop.permute.xlu0 %679
        %v698 = vunpack.c.l.b16 %v570
        %v699 = vunpack.c.l.b16 %v571
        %v700 = vunpack.c.l.b16 %v572
        %v701 = vunpack.c.l.b16 %v573
        %v702 = vunpack.c.l.b16 %v574
        %v703 = vunpack.c.l.b16 %v575
        %v704 = vunpack.c.l.b16 %v576
        %v705 = vunpack.c.l.b16 %v577
        %v706 = vunpack.c.l.b16 %v578
        %v707 = vunpack.c.l.b16 %v579
        %v708 = vunpack.c.l.b16 %v580
        %v709 = vunpack.c.l.b16 %v581
        %v710 = vunpack.c.l.b16 %v582
        %v711 = vunpack.c.l.b16 %v583
        %v712 = vunpack.c.l.b16 %v584
        %v713 = vunpack.c.l.b16 %v585
        %v714 = vpack.c.b16 %v699, %v698
        %v715 = vpack.c.b16 %v701, %v700
        %v716 = vpack.c.b16 %v703, %v702
        %v717 = vpack.c.b16 %v705, %v704
        %v718 = vpack.c.b16 %v707, %v706
        %v719 = vpack.c.b16 %v709, %v708
        %v720 = vpack.c.b16 %v711, %v710
        %v721 = vpack.c.b16 %v713, %v712
        %vm722 = vcmask 261120
        %v724 = vsel %vm722, %v714, 0
        %v727 = vsel %vm722, %v715, 0
        %v730 = vsel %vm722, %v716, 0
        %v733 = vsel %vm722, %v717, 0
        %v736 = vsel %vm722, %v718, 0
        %v739 = vsel %vm722, %v719, 0
        %v742 = vsel %vm722, %v720, 0
        %v745 = vsel %vm722, %v721, 0
        %747 = vmatprep.subr.bf16.mxu0 0
        %748 = vmatpush1.bf16.msra.mxu0 0
        %749 = vmatprep.subr.bf16.mxu0 0
        %750 = vmatpush1.bf16.msra.mxu0 0
        %751 = vmatprep.subr.bf16.mxu0 0
        %752 = vmatpush1.bf16.msra.mxu0 0
        %753 = vmatprep.subr.bf16.mxu0 0
        %754 = vmatpush1.bf16.msra.mxu0 0
        %755 = vmatprep.subr.bf16.mxu0 0
        %756 = vmatpush1.bf16.msra.mxu0 0
        %757 = vmatprep.subr.bf16.mxu0 0
        %758 = vmatpush1.bf16.msra.mxu0 0
        %759 = vmatprep.subr.bf16.mxu0 %v567
        %760 = vmatpush1.bf16.msra.mxu0 %v566
        %761 = vmatprep.subr.bf16.mxu0 %v563
        %762 = vmatpush1.bf16.msra.mxu0 %v562
        %763 = vmatprep.subr.bf16.mxu0 0
        %764 = vmatpush2.bf16.msra.mxu0 0
        %765 = vmatprep.subr.bf16.mxu0 0
        %766 = vmatpush2.bf16.msra.mxu0 0
        %767 = vmatprep.subr.bf16.mxu0 0
        %768 = vmatpush2.bf16.msra.mxu0 0
        %769 = vmatprep.subr.bf16.mxu0 0
        %770 = vmatpush2.bf16.msra.mxu0 0
        %771 = vmatprep.subr.bf16.mxu0 0
        %772 = vmatpush2.bf16.msra.mxu0 0
        %773 = vmatprep.subr.bf16.mxu0 0
        %774 = vmatpush2.bf16.msra.mxu0 0
        %775 = vmatprep.subr.bf16.mxu0 0
        %776 = vmatpush2.bf16.msra.mxu0 0
        %777 = vmatprep.subr.bf16.mxu0 0
        %778 = vmatpush2.bf16.msra.mxu0 0
        %779 = vmatprep.mubr.bf16.mxu0 0
        %780 = vmatmul.mubr.bf16.gmra.mxu0 %v724
        %v781 = vpop.f32.mrf.mxu0
        %v782 = vadd.f32 %v605, %v781
        %v783 = vpop.f32.mrf.mxu0
        %v784 = vadd.f32 %v605, %v783
        %v785 = vpop.f32.mrf.mxu0
        %v786 = vadd.f32 %v610, %v785
        %v787 = vpop.f32.mrf.mxu0
        %v788 = vadd.f32 %v610, %v787
        %789 = vmatprep.mubr.bf16.mxu0 0
        %790 = vmatmul.mubr.bf16.gmra.mxu0 %v727
        %v791 = vpop.f32.mrf.mxu0
        %v792 = vadd.f32 %v615, %v791
        %v793 = vpop.f32.mrf.mxu0
        %v794 = vadd.f32 %v615, %v793
        %v795 = vpop.f32.mrf.mxu0
        %v796 = vadd.f32 %v620, %v795
        %v797 = vpop.f32.mrf.mxu0
        %v798 = vadd.f32 %v620, %v797
        %799 = vmatprep.mubr.bf16.mxu0 0
        %800 = vmatmul.mubr.bf16.gmra.mxu0 %v730
        %v801 = vpop.f32.mrf.mxu0
        %v802 = vadd.f32 %v625, %v801
        %v803 = vpop.f32.mrf.mxu0
        %v804 = vadd.f32 %v625, %v803
        %v805 = vpop.f32.mrf.mxu0
        %v806 = vadd.f32 %v630, %v805
        %v807 = vpop.f32.mrf.mxu0
        %v808 = vadd.f32 %v630, %v807
        %809 = vmatprep.mubr.bf16.mxu0 0
        %810 = vmatmul.mubr.bf16.gmra.mxu0 %v733
        %v811 = vpop.f32.mrf.mxu0
        %v812 = vadd.f32 %v635, %v811
        %v813 = vpop.f32.mrf.mxu0
        %v814 = vadd.f32 %v635, %v813
        %v815 = vpop.f32.mrf.mxu0
        %v816 = vadd.f32 %v640, %v815
        %v817 = vpop.f32.mrf.mxu0
        %v818 = vadd.f32 %v640, %v817
        %819 = vmatprep.mubr.bf16.mxu0 0
        %820 = vmatmul.mubr.bf16.gmra.mxu0 %v736
        %v821 = vpop.f32.mrf.mxu0
        %v822 = vadd.f32 %v645, %v821
        %v823 = vpop.f32.mrf.mxu0
        %v824 = vadd.f32 %v645, %v823
        %v825 = vpop.f32.mrf.mxu0
        %v826 = vadd.f32 %v650, %v825
        %v827 = vpop.f32.mrf.mxu0
        %v828 = vadd.f32 %v650, %v827
        %829 = vmatprep.mubr.bf16.mxu0 0
        %830 = vmatmul.mubr.bf16.gmra.mxu0 %v739
        %v831 = vpop.f32.mrf.mxu0
        %v832 = vadd.f32 %v655, %v831
        %v833 = vpop.f32.mrf.mxu0
        %v834 = vadd.f32 %v655, %v833
        %v835 = vpop.f32.mrf.mxu0
        %v836 = vadd.f32 %v660, %v835
        %v837 = vpop.f32.mrf.mxu0
        %v838 = vadd.f32 %v660, %v837
        %839 = vmatprep.mubr.bf16.mxu0 0
        %840 = vmatmul.mubr.bf16.gmra.mxu0 %v742
        %v841 = vpop.f32.mrf.mxu0
        %v842 = vadd.f32 %v665, %v841
        %v843 = vpop.f32.mrf.mxu0
        %v844 = vadd.f32 %v665, %v843
        %v845 = vpop.f32.mrf.mxu0
        %v846 = vadd.f32 %v670, %v845
        %v847 = vpop.f32.mrf.mxu0
        %v848 = vadd.f32 %v670, %v847
        %849 = vmatprep.mubr.bf16.mxu0 0
        %850 = vmatmul.mubr.bf16.gmra.mxu0 %v745
        %v851 = vpop.f32.mrf.mxu0
        %v852 = vadd.f32 %v675, %v851
        %v853 = vpop.f32.mrf.mxu0
        %v854 = vadd.f32 %v675, %v853
        %v855 = vpop.f32.mrf.mxu0
        %v856 = vadd.f32 %v680, %v855
        %v857 = vpop.f32.mrf.mxu0
        %v858 = vadd.f32 %v680, %v857
        %859 = vdwg.mxu0
        %860 = vmatprep.subr.bf16.mxu0 0
        %861 = vmatpush1.bf16.msra.mxu0 0
        %862 = vmatprep.subr.bf16.mxu0 0
        %863 = vmatpush1.bf16.msra.mxu0 0
        %864 = vmatprep.subr.bf16.mxu0 0
        %865 = vmatpush1.bf16.msra.mxu0 0
        %866 = vmatprep.subr.bf16.mxu0 0
        %867 = vmatpush1.bf16.msra.mxu0 0
        %868 = vmatprep.subr.bf16.mxu0 0
        %869 = vmatpush1.bf16.msra.mxu0 0
        %870 = vmatprep.subr.bf16.mxu0 0
        %871 = vmatpush1.bf16.msra.mxu0 0
        %872 = vmatprep.subr.bf16.mxu0 %v569
        %873 = vmatpush1.bf16.msra.mxu0 %v568
        %874 = vmatprep.subr.bf16.mxu0 %v565
        %875 = vmatpush1.bf16.msra.mxu0 %v564
        %876 = vmatprep.subr.bf16.mxu0 0
        %877 = vmatpush2.bf16.msra.mxu0 0
        %878 = vmatprep.subr.bf16.mxu0 0
        %879 = vmatpush2.bf16.msra.mxu0 0
        %880 = vmatprep.subr.bf16.mxu0 0
        %881 = vmatpush2.bf16.msra.mxu0 0
        %882 = vmatprep.subr.bf16.mxu0 0
        %883 = vmatpush2.bf16.msra.mxu0 0
        %884 = vmatprep.subr.bf16.mxu0 0
        %885 = vmatpush2.bf16.msra.mxu0 0
        %886 = vmatprep.subr.bf16.mxu0 0
        %887 = vmatpush2.bf16.msra.mxu0 0
        %888 = vmatprep.subr.bf16.mxu0 0
        %889 = vmatpush2.bf16.msra.mxu0 0
        %890 = vmatprep.subr.bf16.mxu0 0
        %891 = vmatpush2.bf16.msra.mxu0 0
        %892 = vmatprep.mubr.bf16.mxu0 0
        %893 = vmatmul.mubr.bf16.gmra.mxu0 %v724
        %v894 = vpop.f32.mrf.mxu0
        %v895 = vadd.f32 %v605, %v894
        %v896 = vpop.f32.mrf.mxu0
        %v897 = vadd.f32 %v605, %v896
        %v898 = vpop.f32.mrf.mxu0
        %v899 = vadd.f32 %v610, %v898
        %v900 = vpop.f32.mrf.mxu0
        %v901 = vadd.f32 %v610, %v900
        %902 = vmatprep.mubr.bf16.mxu0 0
        %903 = vmatmul.mubr.bf16.gmra.mxu0 %v727
        %v904 = vpop.f32.mrf.mxu0
        %v905 = vadd.f32 %v615, %v904
        %v906 = vpop.f32.mrf.mxu0
        %v907 = vadd.f32 %v615, %v906
        %v908 = vpop.f32.mrf.mxu0
        %v909 = vadd.f32 %v620, %v908
        %v910 = vpop.f32.mrf.mxu0
        %v911 = vadd.f32 %v620, %v910
        %912 = vmatprep.mubr.bf16.mxu0 0
        %913 = vmatmul.mubr.bf16.gmra.mxu0 %v730
        %v914 = vpop.f32.mrf.mxu0
        %v915 = vadd.f32 %v625, %v914
        %v916 = vpop.f32.mrf.mxu0
        %v917 = vadd.f32 %v625, %v916
        %v918 = vpop.f32.mrf.mxu0
        %v919 = vadd.f32 %v630, %v918
        %v920 = vpop.f32.mrf.mxu0
        %v921 = vadd.f32 %v630, %v920
        %922 = vmatprep.mubr.bf16.mxu0 0
        %923 = vmatmul.mubr.bf16.gmra.mxu0 %v733
        %v924 = vpop.f32.mrf.mxu0
        %v925 = vadd.f32 %v635, %v924
        %v926 = vpop.f32.mrf.mxu0
        %v927 = vadd.f32 %v635, %v926
        %v928 = vpop.f32.mrf.mxu0
        %v929 = vadd.f32 %v640, %v928
        %v930 = vpop.f32.mrf.mxu0
        %v931 = vadd.f32 %v640, %v930
        %932 = vmatprep.mubr.bf16.mxu0 0
        %933 = vmatmul.mubr.bf16.gmra.mxu0 %v736
        %v934 = vpop.f32.mrf.mxu0
        %v935 = vadd.f32 %v645, %v934
        %v936 = vpop.f32.mrf.mxu0
        %v937 = vadd.f32 %v645, %v936
        %v938 = vpop.f32.mrf.mxu0
        %v939 = vadd.f32 %v650, %v938
        %v940 = vpop.f32.mrf.mxu0
        %v941 = vadd.f32 %v650, %v940
        %942 = vmatprep.mubr.bf16.mxu0 0
        %943 = vmatmul.mubr.bf16.gmra.mxu0 %v739
        %v944 = vpop.f32.mrf.mxu0
        %v945 = vadd.f32 %v655, %v944
        %v946 = vpop.f32.mrf.mxu0
        %v947 = vadd.f32 %v655, %v946
        %v948 = vpop.f32.mrf.mxu0
        %v949 = vadd.f32 %v660, %v948
        %v950 = vpop.f32.mrf.mxu0
        %v951 = vadd.f32 %v660, %v950
        %952 = vmatprep.mubr.bf16.mxu0 0
        %953 = vmatmul.mubr.bf16.gmra.mxu0 %v742
        %v954 = vpop.f32.mrf.mxu0
        %v955 = vadd.f32 %v665, %v954
        %v956 = vpop.f32.mrf.mxu0
        %v957 = vadd.f32 %v665, %v956
        %v958 = vpop.f32.mrf.mxu0
        %v959 = vadd.f32 %v670, %v958
        %v960 = vpop.f32.mrf.mxu0
        %v961 = vadd.f32 %v670, %v960
        %962 = vmatprep.mubr.bf16.mxu0 0
        %963 = vmatmul.mubr.bf16.gmra.mxu0 %v745
        %v964 = vpop.f32.mrf.mxu0
        %v965 = vadd.f32 %v675, %v964
        %v966 = vpop.f32.mrf.mxu0
        %v967 = vadd.f32 %v675, %v966
        %v968 = vpop.f32.mrf.mxu0
        %v969 = vadd.f32 %v680, %v968
        %v970 = vpop.f32.mrf.mxu0
        %v971 = vadd.f32 %v680, %v970
        %972 = vdwg.mxu0
        %v973 = vmax.f32 %v782, 0.0
        %v974 = vmax.f32 %v784, 0.0
        %v975 = vmax.f32 %v895, 0.0
        %v976 = vmax.f32 %v897, 0.0
        %v977 = vmax.f32 %v786, 0.0
        %v978 = vmax.f32 %v788, 0.0
        %v979 = vmax.f32 %v899, 0.0
        %v980 = vmax.f32 %v901, 0.0
        %v981 = vmax.f32 %v792, 0.0
        %v982 = vmax.f32 %v794, 0.0
        %v983 = vmax.f32 %v905, 0.0
        %v984 = vmax.f32 %v907, 0.0
        %v985 = vmax.f32 %v796, 0.0
        %v986 = vmax.f32 %v798, 0.0
        %v987 = vmax.f32 %v909, 0.0
        %v988 = vmax.f32 %v911, 0.0
        %v989 = vmax.f32 %v802, 0.0
        %v990 = vmax.f32 %v804, 0.0
        %v991 = vmax.f32 %v915, 0.0
        %v992 = vmax.f32 %v917, 0.0
        %v993 = vmax.f32 %v806, 0.0
        %v994 = vmax.f32 %v808, 0.0
        %v995 = vmax.f32 %v919, 0.0
        %v996 = vmax.f32 %v921, 0.0
        %v997 = vmax.f32 %v812, 0.0
        %v998 = vmax.f32 %v814, 0.0
        %v999 = vmax.f32 %v925, 0.0
        %v1000 = vmax.f32 %v927, 0.0
        %v1001 = vmax.f32 %v816, 0.0
        %v1002 = vmax.f32 %v818, 0.0
        %v1003 = vmax.f32 %v929, 0.0
        %v1004 = vmax.f32 %v931, 0.0
        %v1005 = vmax.f32 %v822, 0.0
        %v1006 = vmax.f32 %v824, 0.0
        %v1007 = vmax.f32 %v935, 0.0
        %v1008 = vmax.f32 %v937, 0.0
        %v1009 = vmax.f32 %v826, 0.0
        %v1010 = vmax.f32 %v828, 0.0
        %v1011 = vmax.f32 %v939, 0.0
        %v1012 = vmax.f32 %v941, 0.0
        %v1013 = vmax.f32 %v832, 0.0
        %v1014 = vmax.f32 %v834, 0.0
        %v1015 = vmax.f32 %v945, 0.0
        %v1016 = vmax.f32 %v947, 0.0
        %v1017 = vmax.f32 %v836, 0.0
        %v1018 = vmax.f32 %v838, 0.0
        %v1019 = vmax.f32 %v949, 0.0
        %v1020 = vmax.f32 %v951, 0.0
        %v1021 = vmax.f32 %v842, 0.0
        %v1022 = vmax.f32 %v844, 0.0
        %v1023 = vmax.f32 %v955, 0.0
        %v1024 = vmax.f32 %v957, 0.0
        %v1025 = vmax.f32 %v846, 0.0
        %v1026 = vmax.f32 %v848, 0.0
        %v1027 = vmax.f32 %v959, 0.0
        %v1028 = vmax.f32 %v961, 0.0
        %v1029 = vmax.f32 %v852, 0.0
        %v1030 = vmax.f32 %v854, 0.0
        %v1031 = vmax.f32 %v965, 0.0
        %v1032 = vmax.f32 %v967, 0.0
        %v1033 = vmax.f32 %v856, 0.0
        %v1034 = vmax.f32 %v858, 0.0
        %v1035 = vmax.f32 %v969, 0.0
        %v1036 = vmax.f32 %v971, 0.0
        %v1037 = vld [vmem:[%s3] sm:$0xf]
        %v1038 = vld [vmem:[%s3 + $0x4] sm:$0xf]
        %v1039 = vld [vmem:[%s3 + $0x8] sm:$0xf]
        %v1040 = vld [vmem:[%s3 + $0xc] sm:$0xf]
        %v1041 = vld [vmem:[%s3 + $0x10] sm:$0xf]
        %v1042 = vld [vmem:[%s3 + $0x14] sm:$0xf]
        %v1043 = vld [vmem:[%s3 + $0x18] sm:$0xf]
        %v1044 = vld [vmem:[%s3 + $0x1c] sm:$0xf]
        %v1045 = vld [vmem:[%s3 + $0x20] sm:$0xf]
        %v1046 = vld [vmem:[%s3 + $0x24] sm:$0xf]
        %v1047 = vld [vmem:[%s3 + $0x28] sm:$0xf]
        %v1048 = vld [vmem:[%s3 + $0x2c] sm:$0xf]
        %v1049 = vld [vmem:[%s3 + $0x30] sm:$0xf]
        %v1050 = vld [vmem:[%s3 + $0x34] sm:$0xf]
        %v1051 = vld [vmem:[%s3 + $0x38] sm:$0xf]
        %v1052 = vld [vmem:[%s3 + $0x3c] sm:$0xf]
        %v1053 = vpack.c.bf16 %v977, %v973
        %v1054 = vpack.c.bf16 %v978, %v974
        %v1055 = vpack.c.bf16 %v979, %v975
        %v1056 = vpack.c.bf16 %v980, %v976
        %v1057 = vpack.c.bf16 %v985, %v981
        %v1058 = vpack.c.bf16 %v986, %v982
        %v1059 = vpack.c.bf16 %v987, %v983
        %v1060 = vpack.c.bf16 %v988, %v984
        %v1061 = vpack.c.bf16 %v993, %v989
        %v1062 = vpack.c.bf16 %v994, %v990
        %v1063 = vpack.c.bf16 %v995, %v991
        %v1064 = vpack.c.bf16 %v996, %v992
        %v1065 = vpack.c.bf16 %v1001, %v997
        %v1066 = vpack.c.bf16 %v1002, %v998
        %v1067 = vpack.c.bf16 %v1003, %v999
        %v1068 = vpack.c.bf16 %v1004, %v1000
        %v1069 = vpack.c.bf16 %v1009, %v1005
        %v1070 = vpack.c.bf16 %v1010, %v1006
        %v1071 = vpack.c.bf16 %v1011, %v1007
        %v1072 = vpack.c.bf16 %v1012, %v1008
        %v1073 = vpack.c.bf16 %v1017, %v1013
        %v1074 = vpack.c.bf16 %v1018, %v1014
        %v1075 = vpack.c.bf16 %v1019, %v1015
        %v1076 = vpack.c.bf16 %v1020, %v1016
        %v1077 = vpack.c.bf16 %v1025, %v1021
        %v1078 = vpack.c.bf16 %v1026, %v1022
        %v1079 = vpack.c.bf16 %v1027, %v1023
        %v1080 = vpack.c.bf16 %v1028, %v1024
        %v1081 = vpack.c.bf16 %v1033, %v1029
        %v1082 = vpack.c.bf16 %v1034, %v1030
        %v1083 = vpack.c.bf16 %v1035, %v1031
        %v1084 = vpack.c.bf16 %v1036, %v1032
        %v1085 = vld [vmem:[%s4] sm:$0xff]
        %v1086 = vld [vmem:[%s4 + $0x8] sm:$0xff]
        %v1087 = vld [vmem:[%s4 + $0x10] sm:$0xff]
        %v1088 = vld [vmem:[%s4 + $0x18] sm:$0xff]
        %v1089 = vld [vmem:[%s4 + $0x20] sm:$0xff]
        %v1090 = vld [vmem:[%s4 + $0x28] sm:$0xff]
        %v1091 = vld [vmem:[%s4 + $0x30] sm:$0xff]
        %v1092 = vld [vmem:[%s4 + $0x38] sm:$0xff]
        %v1093 = vld [vmem:[%s4 + $0x40] sm:$0xff]
        %v1094 = vld [vmem:[%s4 + $0x48] sm:$0xff]
        %v1095 = vld [vmem:[%s4 + $0x50] sm:$0xff]
        %v1096 = vld [vmem:[%s4 + $0x58] sm:$0xff]
        %v1097 = vld [vmem:[%s4 + $0x60] sm:$0xff]
        %v1098 = vld [vmem:[%s4 + $0x68] sm:$0xff]
        %v1099 = vld [vmem:[%s4 + $0x70] sm:$0xff]
        %v1100 = vld [vmem:[%s4 + $0x78] sm:$0xff]
        %1102 = vset.pattern.permute.xlu0 0
        %1103 = vperm.xlu0 %1102, %v1085
        %v1104 = vpop.permute.xlu0 %1103
        %1107 = vset.pattern.permute.xlu0 0
        %1108 = vperm.xlu0 %1107, %v1086
        %v1109 = vpop.permute.xlu0 %1108
        %1112 = vset.pattern.permute.xlu0 0
        %1113 = vperm.xlu0 %1112, %v1087
        %v1114 = vpop.permute.xlu0 %1113
        %1117 = vset.pattern.permute.xlu0 0
        %1118 = vperm.xlu0 %1117, %v1088
        %v1119 = vpop.permute.xlu0 %1118
        %1122 = vset.pattern.permute.xlu0 0
        %1123 = vperm.xlu0 %1122, %v1089
        %v1124 = vpop.permute.xlu0 %1123
        %1127 = vset.pattern.permute.xlu0 0
        %1128 = vperm.xlu0 %1127, %v1090
        %v1129 = vpop.permute.xlu0 %1128
        %1132 = vset.pattern.permute.xlu0 0
        %1133 = vperm.xlu0 %1132, %v1091
        %v1134 = vpop.permute.xlu0 %1133
        %1137 = vset.pattern.permute.xlu0 0
        %1138 = vperm.xlu0 %1137, %v1092
        %v1139 = vpop.permute.xlu0 %1138
        %1142 = vset.pattern.permute.xlu0 0
        %1143 = vperm.xlu0 %1142, %v1093
        %v1144 = vpop.permute.xlu0 %1143
        %1147 = vset.pattern.permute.xlu0 0
        %1148 = vperm.xlu0 %1147, %v1094
        %v1149 = vpop.permute.xlu0 %1148
        %1152 = vset.pattern.permute.xlu0 0
        %1153 = vperm.xlu0 %1152, %v1095
        %v1154 = vpop.permute.xlu0 %1153
        %1157 = vset.pattern.permute.xlu0 0
        %1158 = vperm.xlu0 %1157, %v1096
        %v1159 = vpop.permute.xlu0 %1158
        %1162 = vset.pattern.permute.xlu0 0
        %1163 = vperm.xlu0 %1162, %v1097
        %v1164 = vpop.permute.xlu0 %1163
        %1167 = vset.pattern.permute.xlu0 0
        %1168 = vperm.xlu0 %1167, %v1098
        %v1169 = vpop.permute.xlu0 %1168
        %1172 = vset.pattern.permute.xlu0 0
        %1173 = vperm.xlu0 %1172, %v1099
        %v1174 = vpop.permute.xlu0 %1173
        %1177 = vset.pattern.permute.xlu0 0
        %1178 = vperm.xlu0 %1177, %v1100
        %v1179 = vpop.permute.xlu0 %1178
        %v1197 = vunpack.c.l.b16 %v1037
        %v1198 = vunpack.c.l.b16 %v1038
        %v1199 = vunpack.c.l.b16 %v1039
        %v1200 = vunpack.c.l.b16 %v1040
        %v1201 = vunpack.c.l.b16 %v1041
        %v1202 = vunpack.c.l.b16 %v1042
        %v1203 = vunpack.c.l.b16 %v1043
        %v1204 = vunpack.c.l.b16 %v1044
        %v1205 = vunpack.c.l.b16 %v1045
        %v1206 = vunpack.c.l.b16 %v1046
        %v1207 = vunpack.c.l.b16 %v1047
        %v1208 = vunpack.c.l.b16 %v1048
        %v1209 = vunpack.c.l.b16 %v1049
        %v1210 = vunpack.c.l.b16 %v1050
        %v1211 = vunpack.c.l.b16 %v1051
        %v1212 = vunpack.c.l.b16 %v1052
        %v1213 = vpack.c.b16 %v1198, %v1197
        %v1214 = vpack.c.b16 %v1200, %v1199
        %v1215 = vpack.c.b16 %v1202, %v1201
        %v1216 = vpack.c.b16 %v1204, %v1203
        %v1217 = vpack.c.b16 %v1206, %v1205
        %v1218 = vpack.c.b16 %v1208, %v1207
        %v1219 = vpack.c.b16 %v1210, %v1209
        %v1220 = vpack.c.b16 %v1212, %v1211
        %1229 = vmatprep.subr.bf16.mxu0 %v1082
        %1230 = vmatpush1.bf16.msra.mxu0 %v1081
        %1231 = vmatprep.subr.bf16.mxu0 %v1078
        %1232 = vmatpush1.bf16.msra.mxu0 %v1077
        %1233 = vmatprep.subr.bf16.mxu0 %v1074
        %1234 = vmatpush1.bf16.msra.mxu0 %v1073
        %1235 = vmatprep.subr.bf16.mxu0 %v1070
        %1236 = vmatpush1.bf16.msra.mxu0 %v1069
        %1237 = vmatprep.subr.bf16.mxu0 %v1066
        %1238 = vmatpush1.bf16.msra.mxu0 %v1065
        %1239 = vmatprep.subr.bf16.mxu0 %v1062
        %1240 = vmatpush1.bf16.msra.mxu0 %v1061
        %1241 = vmatprep.subr.bf16.mxu0 %v1058
        %1242 = vmatpush1.bf16.msra.mxu0 %v1057
        %1243 = vmatprep.subr.bf16.mxu0 %v1054
        %1244 = vmatpush1.bf16.msra.mxu0 %v1053
        %1245 = vmatprep.subr.bf16.mxu0 0
        %1246 = vmatpush2.bf16.msra.mxu0 0
        %1247 = vmatprep.subr.bf16.mxu0 0
        %1248 = vmatpush2.bf16.msra.mxu0 0
        %1249 = vmatprep.subr.bf16.mxu0 0
        %1250 = vmatpush2.bf16.msra.mxu0 0
        %1251 = vmatprep.subr.bf16.mxu0 0
        %1252 = vmatpush2.bf16.msra.mxu0 0
        %1253 = vmatprep.subr.bf16.mxu0 0
        %1254 = vmatpush2.bf16.msra.mxu0 0
        %1255 = vmatprep.subr.bf16.mxu0 0
        %1256 = vmatpush2.bf16.msra.mxu0 0
        %1257 = vmatprep.subr.bf16.mxu0 0
        %1258 = vmatpush2.bf16.msra.mxu0 0
        %1259 = vmatprep.subr.bf16.mxu0 0
        %1260 = vmatpush2.bf16.msra.mxu0 0
        %1261 = vmatprep.mubr.bf16.mxu0 0
        %1262 = vmatmul.mubr.bf16.gmra.mxu0 %v1213
        %v1263 = vpop.f32.mrf.mxu0
        %v1264 = vadd.f32 %v1104, %v1263
        %v1265 = vpop.f32.mrf.mxu0
        %v1266 = vadd.f32 %v1104, %v1265
        %v1267 = vpop.f32.mrf.mxu0
        %v1268 = vadd.f32 %v1109, %v1267
        %v1269 = vpop.f32.mrf.mxu0
        %v1270 = vadd.f32 %v1109, %v1269
        %1271 = vmatprep.mubr.bf16.mxu0 0
        %1272 = vmatmul.mubr.bf16.gmra.mxu0 %v1214
        %v1273 = vpop.f32.mrf.mxu0
        %v1274 = vadd.f32 %v1114, %v1273
        %v1275 = vpop.f32.mrf.mxu0
        %v1276 = vadd.f32 %v1114, %v1275
        %v1277 = vpop.f32.mrf.mxu0
        %v1278 = vadd.f32 %v1119, %v1277
        %v1279 = vpop.f32.mrf.mxu0
        %v1280 = vadd.f32 %v1119, %v1279
        %1281 = vmatprep.mubr.bf16.mxu0 0
        %1282 = vmatmul.mubr.bf16.gmra.mxu0 %v1215
        %v1283 = vpop.f32.mrf.mxu0
        %v1284 = vadd.f32 %v1124, %v1283
        %v1285 = vpop.f32.mrf.mxu0
        %v1286 = vadd.f32 %v1124, %v1285
        %v1287 = vpop.f32.mrf.mxu0
        %v1288 = vadd.f32 %v1129, %v1287
        %v1289 = vpop.f32.mrf.mxu0
        %v1290 = vadd.f32 %v1129, %v1289
        %1291 = vmatprep.mubr.bf16.mxu0 0
        %1292 = vmatmul.mubr.bf16.gmra.mxu0 %v1216
        %v1293 = vpop.f32.mrf.mxu0
        %v1294 = vadd.f32 %v1134, %v1293
        %v1295 = vpop.f32.mrf.mxu0
        %v1296 = vadd.f32 %v1134, %v1295
        %v1297 = vpop.f32.mrf.mxu0
        %v1298 = vadd.f32 %v1139, %v1297
        %v1299 = vpop.f32.mrf.mxu0
        %v1300 = vadd.f32 %v1139, %v1299
        %1301 = vmatprep.mubr.bf16.mxu0 0
        %1302 = vmatmul.mubr.bf16.gmra.mxu0 %v1217
        %v1303 = vpop.f32.mrf.mxu0
        %v1304 = vadd.f32 %v1144, %v1303
        %v1305 = vpop.f32.mrf.mxu0
        %v1306 = vadd.f32 %v1144, %v1305
        %v1307 = vpop.f32.mrf.mxu0
        %v1308 = vadd.f32 %v1149, %v1307
        %v1309 = vpop.f32.mrf.mxu0
        %v1310 = vadd.f32 %v1149, %v1309
        %1311 = vmatprep.mubr.bf16.mxu0 0
        %1312 = vmatmul.mubr.bf16.gmra.mxu0 %v1218
        %v1313 = vpop.f32.mrf.mxu0
        %v1314 = vadd.f32 %v1154, %v1313
        %v1315 = vpop.f32.mrf.mxu0
        %v1316 = vadd.f32 %v1154, %v1315
        %v1317 = vpop.f32.mrf.mxu0
        %v1318 = vadd.f32 %v1159, %v1317
        %v1319 = vpop.f32.mrf.mxu0
        %v1320 = vadd.f32 %v1159, %v1319
        %1321 = vmatprep.mubr.bf16.mxu0 0
        %1322 = vmatmul.mubr.bf16.gmra.mxu0 %v1219
        %v1323 = vpop.f32.mrf.mxu0
        %v1324 = vadd.f32 %v1164, %v1323
        %v1325 = vpop.f32.mrf.mxu0
        %v1326 = vadd.f32 %v1164, %v1325
        %v1327 = vpop.f32.mrf.mxu0
        %v1328 = vadd.f32 %v1169, %v1327
        %v1329 = vpop.f32.mrf.mxu0
        %v1330 = vadd.f32 %v1169, %v1329
        %1331 = vmatprep.mubr.bf16.mxu0 0
        %1332 = vmatmul.mubr.bf16.gmra.mxu0 %v1220
        %v1333 = vpop.f32.mrf.mxu0
        %v1334 = vadd.f32 %v1174, %v1333
        %v1335 = vpop.f32.mrf.mxu0
        %v1336 = vadd.f32 %v1174, %v1335
        %v1337 = vpop.f32.mrf.mxu0
        %v1338 = vadd.f32 %v1179, %v1337
        %v1339 = vpop.f32.mrf.mxu0
        %v1340 = vadd.f32 %v1179, %v1339
        %1341 = vdwg.mxu0
        %1342 = vmatprep.subr.bf16.mxu0 %v1084
        %1343 = vmatpush1.bf16.msra.mxu0 %v1083
        %1344 = vmatprep.subr.bf16.mxu0 %v1080
        %1345 = vmatpush1.bf16.msra.mxu0 %v1079
        %1346 = vmatprep.subr.bf16.mxu0 %v1076
        %1347 = vmatpush1.bf16.msra.mxu0 %v1075
        %1348 = vmatprep.subr.bf16.mxu0 %v1072
        %1349 = vmatpush1.bf16.msra.mxu0 %v1071
        %1350 = vmatprep.subr.bf16.mxu0 %v1068
        %1351 = vmatpush1.bf16.msra.mxu0 %v1067
        %1352 = vmatprep.subr.bf16.mxu0 %v1064
        %1353 = vmatpush1.bf16.msra.mxu0 %v1063
        %1354 = vmatprep.subr.bf16.mxu0 %v1060
        %1355 = vmatpush1.bf16.msra.mxu0 %v1059
        %1356 = vmatprep.subr.bf16.mxu0 %v1056
        %1357 = vmatpush1.bf16.msra.mxu0 %v1055
        %1358 = vmatprep.subr.bf16.mxu0 0
        %1359 = vmatpush2.bf16.msra.mxu0 0
        %1360 = vmatprep.subr.bf16.mxu0 0
        %1361 = vmatpush2.bf16.msra.mxu0 0
        %1362 = vmatprep.subr.bf16.mxu0 0
        %1363 = vmatpush2.bf16.msra.mxu0 0
        %1364 = vmatprep.subr.bf16.mxu0 0
        %1365 = vmatpush2.bf16.msra.mxu0 0
        %1366 = vmatprep.subr.bf16.mxu0 0
        %1367 = vmatpush2.bf16.msra.mxu0 0
        %1368 = vmatprep.subr.bf16.mxu0 0
        %1369 = vmatpush2.bf16.msra.mxu0 0
        %1370 = vmatprep.subr.bf16.mxu0 0
        %1371 = vmatpush2.bf16.msra.mxu0 0
        %1372 = vmatprep.subr.bf16.mxu0 0
        %1373 = vmatpush2.bf16.msra.mxu0 0
        %1374 = vmatprep.mubr.bf16.mxu0 0
        %1375 = vmatmul.mubr.bf16.gmra.mxu0 %v1213
        %v1376 = vpop.f32.mrf.mxu0
        %v1377 = vadd.f32 %v1104, %v1376
        %v1378 = vpop.f32.mrf.mxu0
        %v1379 = vadd.f32 %v1104, %v1378
        %v1380 = vpop.f32.mrf.mxu0
        %v1381 = vadd.f32 %v1109, %v1380
        %v1382 = vpop.f32.mrf.mxu0
        %v1383 = vadd.f32 %v1109, %v1382
        %1384 = vmatprep.mubr.bf16.mxu0 0
        %1385 = vmatmul.mubr.bf16.gmra.mxu0 %v1214
        %v1386 = vpop.f32.mrf.mxu0
        %v1387 = vadd.f32 %v1114, %v1386
        %v1388 = vpop.f32.mrf.mxu0
        %v1389 = vadd.f32 %v1114, %v1388
        %v1390 = vpop.f32.mrf.mxu0
        %v1391 = vadd.f32 %v1119, %v1390
        %v1392 = vpop.f32.mrf.mxu0
        %v1393 = vadd.f32 %v1119, %v1392
        %1394 = vmatprep.mubr.bf16.mxu0 0
        %1395 = vmatmul.mubr.bf16.gmra.mxu0 %v1215
        %v1396 = vpop.f32.mrf.mxu0
        %v1397 = vadd.f32 %v1124, %v1396
        %v1398 = vpop.f32.mrf.mxu0
        %v1399 = vadd.f32 %v1124, %v1398
        %v1400 = vpop.f32.mrf.mxu0
        %v1401 = vadd.f32 %v1129, %v1400
        %v1402 = vpop.f32.mrf.mxu0
        %v1403 = vadd.f32 %v1129, %v1402
        %1404 = vmatprep.mubr.bf16.mxu0 0
        %1405 = vmatmul.mubr.bf16.gmra.mxu0 %v1216
        %v1406 = vpop.f32.mrf.mxu0
        %v1407 = vadd.f32 %v1134, %v1406
        %v1408 = vpop.f32.mrf.mxu0
        %v1409 = vadd.f32 %v1134, %v1408
        %v1410 = vpop.f32.mrf.mxu0
        %v1411 = vadd.f32 %v1139, %v1410
        %v1412 = vpop.f32.mrf.mxu0
        %v1413 = vadd.f32 %v1139, %v1412
        %1414 = vmatprep.mubr.bf16.mxu0 0
        %1415 = vmatmul.mubr.bf16.gmra.mxu0 %v1217
        %v1416 = vpop.f32.mrf.mxu0
        %v1417 = vadd.f32 %v1144, %v1416
        %v1418 = vpop.f32.mrf.mxu0
        %v1419 = vadd.f32 %v1144, %v1418
        %v1420 = vpop.f32.mrf.mxu0
        %v1421 = vadd.f32 %v1149, %v1420
        %v1422 = vpop.f32.mrf.mxu0
        %v1423 = vadd.f32 %v1149, %v1422
        %1424 = vmatprep.mubr.bf16.mxu0 0
        %1425 = vmatmul.mubr.bf16.gmra.mxu0 %v1218
        %v1426 = vpop.f32.mrf.mxu0
        %v1427 = vadd.f32 %v1154, %v1426
        %v1428 = vpop.f32.mrf.mxu0
        %v1429 = vadd.f32 %v1154, %v1428
        %v1430 = vpop.f32.mrf.mxu0
        %v1431 = vadd.f32 %v1159, %v1430
        %v1432 = vpop.f32.mrf.mxu0
        %v1433 = vadd.f32 %v1159, %v1432
        %1434 = vmatprep.mubr.bf16.mxu0 0
        %1435 = vmatmul.mubr.bf16.gmra.mxu0 %v1219
        %v1436 = vpop.f32.mrf.mxu0
        %v1437 = vadd.f32 %v1164, %v1436
        %v1438 = vpop.f32.mrf.mxu0
        %v1439 = vadd.f32 %v1164, %v1438
        %v1440 = vpop.f32.mrf.mxu0
        %v1441 = vadd.f32 %v1169, %v1440
        %v1442 = vpop.f32.mrf.mxu0
        %v1443 = vadd.f32 %v1169, %v1442
        %1444 = vmatprep.mubr.bf16.mxu0 0
        %1445 = vmatmul.mubr.bf16.gmra.mxu0 %v1220
        %v1446 = vpop.f32.mrf.mxu0
        %v1447 = vadd.f32 %v1174, %v1446
        %v1448 = vpop.f32.mrf.mxu0
        %v1449 = vadd.f32 %v1174, %v1448
        %v1450 = vpop.f32.mrf.mxu0
        %v1451 = vadd.f32 %v1179, %v1450
        %v1452 = vpop.f32.mrf.mxu0
        %v1453 = vadd.f32 %v1179, %v1452
        %1454 = vdwg.mxu0
        %v1455 = vmax.f32 %v1264, 0.0
        %v1456 = vmax.f32 %v1266, 0.0
        %v1457 = vmax.f32 %v1377, 0.0
        %v1458 = vmax.f32 %v1379, 0.0
        %v1459 = vmax.f32 %v1268, 0.0
        %v1460 = vmax.f32 %v1270, 0.0
        %v1461 = vmax.f32 %v1381, 0.0
        %v1462 = vmax.f32 %v1383, 0.0
        %v1463 = vmax.f32 %v1274, 0.0
        %v1464 = vmax.f32 %v1276, 0.0
        %v1465 = vmax.f32 %v1387, 0.0
        %v1466 = vmax.f32 %v1389, 0.0
        %v1467 = vmax.f32 %v1278, 0.0
        %v1468 = vmax.f32 %v1280, 0.0
        %v1469 = vmax.f32 %v1391, 0.0
        %v1470 = vmax.f32 %v1393, 0.0
        %v1471 = vmax.f32 %v1284, 0.0
        %v1472 = vmax.f32 %v1286, 0.0
        %v1473 = vmax.f32 %v1397, 0.0
        %v1474 = vmax.f32 %v1399, 0.0
        %v1475 = vmax.f32 %v1288, 0.0
        %v1476 = vmax.f32 %v1290, 0.0
        %v1477 = vmax.f32 %v1401, 0.0
        %v1478 = vmax.f32 %v1403, 0.0
        %v1479 = vmax.f32 %v1294, 0.0
        %v1480 = vmax.f32 %v1296, 0.0
        %v1481 = vmax.f32 %v1407, 0.0
        %v1482 = vmax.f32 %v1409, 0.0
        %v1483 = vmax.f32 %v1298, 0.0
        %v1484 = vmax.f32 %v1300, 0.0
        %v1485 = vmax.f32 %v1411, 0.0
        %v1486 = vmax.f32 %v1413, 0.0
        %v1487 = vmax.f32 %v1304, 0.0
        %v1488 = vmax.f32 %v1306, 0.0
        %v1489 = vmax.f32 %v1417, 0.0
        %v1490 = vmax.f32 %v1419, 0.0
        %v1491 = vmax.f32 %v1308, 0.0
        %v1492 = vmax.f32 %v1310, 0.0
        %v1493 = vmax.f32 %v1421, 0.0
        %v1494 = vmax.f32 %v1423, 0.0
        %v1495 = vmax.f32 %v1314, 0.0
        %v1496 = vmax.f32 %v1316, 0.0
        %v1497 = vmax.f32 %v1427, 0.0
        %v1498 = vmax.f32 %v1429, 0.0
        %v1499 = vmax.f32 %v1318, 0.0
        %v1500 = vmax.f32 %v1320, 0.0
        %v1501 = vmax.f32 %v1431, 0.0
        %v1502 = vmax.f32 %v1433, 0.0
        %v1503 = vmax.f32 %v1324, 0.0
        %v1504 = vmax.f32 %v1326, 0.0
        %v1505 = vmax.f32 %v1437, 0.0
        %v1506 = vmax.f32 %v1439, 0.0
        %v1507 = vmax.f32 %v1328, 0.0
        %v1508 = vmax.f32 %v1330, 0.0
        %v1509 = vmax.f32 %v1441, 0.0
        %v1510 = vmax.f32 %v1443, 0.0
        %v1511 = vmax.f32 %v1334, 0.0
        %v1512 = vmax.f32 %v1336, 0.0
        %v1513 = vmax.f32 %v1447, 0.0
        %v1514 = vmax.f32 %v1449, 0.0
        %v1515 = vmax.f32 %v1338, 0.0
        %v1516 = vmax.f32 %v1340, 0.0
        %v1517 = vmax.f32 %v1451, 0.0
        %v1518 = vmax.f32 %v1453, 0.0
        %v1519 = vadd.f32 %v1455, %v973
        %v1520 = vadd.f32 %v1456, %v974
        %v1521 = vadd.f32 %v1457, %v975
        %v1522 = vadd.f32 %v1458, %v976
        %v1523 = vadd.f32 %v1459, %v977
        %v1524 = vadd.f32 %v1460, %v978
        %v1525 = vadd.f32 %v1461, %v979
        %v1526 = vadd.f32 %v1462, %v980
        %v1527 = vadd.f32 %v1463, %v981
        %v1528 = vadd.f32 %v1464, %v982
        %v1529 = vadd.f32 %v1465, %v983
        %v1530 = vadd.f32 %v1466, %v984
        %v1531 = vadd.f32 %v1467, %v985
        %v1532 = vadd.f32 %v1468, %v986
        %v1533 = vadd.f32 %v1469, %v987
        %v1534 = vadd.f32 %v1470, %v988
        %v1535 = vadd.f32 %v1471, %v989
        %v1536 = vadd.f32 %v1472, %v990
        %v1537 = vadd.f32 %v1473, %v991
        %v1538 = vadd.f32 %v1474, %v992
        %v1539 = vadd.f32 %v1475, %v993
        %v1540 = vadd.f32 %v1476, %v994
        %v1541 = vadd.f32 %v1477, %v995
        %v1542 = vadd.f32 %v1478, %v996
        %v1543 = vadd.f32 %v1479, %v997
        %v1544 = vadd.f32 %v1480, %v998
        %v1545 = vadd.f32 %v1481, %v999
        %v1546 = vadd.f32 %v1482, %v1000
        %v1547 = vadd.f32 %v1483, %v1001
        %v1548 = vadd.f32 %v1484, %v1002
        %v1549 = vadd.f32 %v1485, %v1003
        %v1550 = vadd.f32 %v1486, %v1004
        %v1551 = vadd.f32 %v1487, %v1005
        %v1552 = vadd.f32 %v1488, %v1006
        %v1553 = vadd.f32 %v1489, %v1007
        %v1554 = vadd.f32 %v1490, %v1008
        %v1555 = vadd.f32 %v1491, %v1009
        %v1556 = vadd.f32 %v1492, %v1010
        %v1557 = vadd.f32 %v1493, %v1011
        %v1558 = vadd.f32 %v1494, %v1012
        %v1559 = vadd.f32 %v1495, %v1013
        %v1560 = vadd.f32 %v1496, %v1014
        %v1561 = vadd.f32 %v1497, %v1015
        %v1562 = vadd.f32 %v1498, %v1016
        %v1563 = vadd.f32 %v1499, %v1017
        %v1564 = vadd.f32 %v1500, %v1018
        %v1565 = vadd.f32 %v1501, %v1019
        %v1566 = vadd.f32 %v1502, %v1020
        %v1567 = vadd.f32 %v1503, %v1021
        %v1568 = vadd.f32 %v1504, %v1022
        %v1569 = vadd.f32 %v1505, %v1023
        %v1570 = vadd.f32 %v1506, %v1024
        %v1571 = vadd.f32 %v1507, %v1025
        %v1572 = vadd.f32 %v1508, %v1026
        %v1573 = vadd.f32 %v1509, %v1027
        %v1574 = vadd.f32 %v1510, %v1028
        %v1575 = vadd.f32 %v1511, %v1029
        %v1576 = vadd.f32 %v1512, %v1030
        %v1577 = vadd.f32 %v1513, %v1031
        %v1578 = vadd.f32 %v1514, %v1032
        %v1579 = vadd.f32 %v1515, %v1033
        %v1580 = vadd.f32 %v1516, %v1034
        %v1581 = vadd.f32 %v1517, %v1035
        %v1582 = vadd.f32 %v1518, %v1036
        %v1583 = vld [vmem:[%s5] sm:$0xf]
        %v1584 = vld [vmem:[%s5 + $0x4] sm:$0xf]
        %v1585 = vld [vmem:[%s5 + $0x8] sm:$0xf]
        %v1586 = vld [vmem:[%s5 + $0xc] sm:$0xf]
        %v1587 = vld [vmem:[%s5 + $0x10] sm:$0xf]
        %v1588 = vld [vmem:[%s5 + $0x14] sm:$0xf]
        %v1589 = vld [vmem:[%s5 + $0x18] sm:$0xf]
        %v1590 = vld [vmem:[%s5 + $0x1c] sm:$0xf]
        %v1591 = vld [vmem:[%s5 + $0x20] sm:$0xf]
        %v1592 = vld [vmem:[%s5 + $0x24] sm:$0xf]
        %v1593 = vld [vmem:[%s5 + $0x28] sm:$0xf]
        %v1594 = vld [vmem:[%s5 + $0x2c] sm:$0xf]
        %v1595 = vld [vmem:[%s5 + $0x30] sm:$0xf]
        %v1596 = vld [vmem:[%s5 + $0x34] sm:$0xf]
        %v1597 = vld [vmem:[%s5 + $0x38] sm:$0xf]
        %v1598 = vld [vmem:[%s5 + $0x3c] sm:$0xf]
        %v1599 = vpack.c.bf16 %v1523, %v1519
        %v1600 = vpack.c.bf16 %v1524, %v1520
        %v1601 = vpack.c.bf16 %v1525, %v1521
        %v1602 = vpack.c.bf16 %v1526, %v1522
        %v1603 = vpack.c.bf16 %v1531, %v1527
        %v1604 = vpack.c.bf16 %v1532, %v1528
        %v1605 = vpack.c.bf16 %v1533, %v1529
        %v1606 = vpack.c.bf16 %v1534, %v1530
        %v1607 = vpack.c.bf16 %v1539, %v1535
        %v1608 = vpack.c.bf16 %v1540, %v1536
        %v1609 = vpack.c.bf16 %v1541, %v1537
        %v1610 = vpack.c.bf16 %v1542, %v1538
        %v1611 = vpack.c.bf16 %v1547, %v1543
        %v1612 = vpack.c.bf16 %v1548, %v1544
        %v1613 = vpack.c.bf16 %v1549, %v1545
        %v1614 = vpack.c.bf16 %v1550, %v1546
        %v1615 = vpack.c.bf16 %v1555, %v1551
        %v1616 = vpack.c.bf16 %v1556, %v1552
        %v1617 = vpack.c.bf16 %v1557, %v1553
        %v1618 = vpack.c.bf16 %v1558, %v1554
        %v1619 = vpack.c.bf16 %v1563, %v1559
        %v1620 = vpack.c.bf16 %v1564, %v1560
        %v1621 = vpack.c.bf16 %v1565, %v1561
        %v1622 = vpack.c.bf16 %v1566, %v1562
        %v1623 = vpack.c.bf16 %v1571, %v1567
        %v1624 = vpack.c.bf16 %v1572, %v1568
        %v1625 = vpack.c.bf16 %v1573, %v1569
        %v1626 = vpack.c.bf16 %v1574, %v1570
        %v1627 = vpack.c.bf16 %v1579, %v1575
        %v1628 = vpack.c.bf16 %v1580, %v1576
        %v1629 = vpack.c.bf16 %v1581, %v1577
        %v1630 = vpack.c.bf16 %v1582, %v1578
        %v1631 = vld [vmem:[%s6] sm:$0xff]
        %v1632 = vld [vmem:[%s6 + $0x8] sm:$0xff]
        %v1633 = vld [vmem:[%s6 + $0x10] sm:$0xff]
        %v1634 = vld [vmem:[%s6 + $0x18] sm:$0xff]
        %v1635 = vld [vmem:[%s6 + $0x20] sm:$0xff]
        %v1636 = vld [vmem:[%s6 + $0x28] sm:$0xff]
        %v1637 = vld [vmem:[%s6 + $0x30] sm:$0xff]
        %v1638 = vld [vmem:[%s6 + $0x38] sm:$0xff]
        %v1639 = vld [vmem:[%s6 + $0x40] sm:$0xff]
        %v1640 = vld [vmem:[%s6 + $0x48] sm:$0xff]
        %v1641 = vld [vmem:[%s6 + $0x50] sm:$0xff]
        %v1642 = vld [vmem:[%s6 + $0x58] sm:$0xff]
        %v1643 = vld [vmem:[%s6 + $0x60] sm:$0xff]
        %v1644 = vld [vmem:[%s6 + $0x68] sm:$0xff]
        %v1645 = vld [vmem:[%s6 + $0x70] sm:$0xff]
        %v1646 = vld [vmem:[%s6 + $0x78] sm:$0xff]
        %1648 = vset.pattern.permute.xlu0 0
        %1649 = vperm.xlu0 %1648, %v1631
        %v1650 = vpop.permute.xlu0 %1649
        %1653 = vset.pattern.permute.xlu0 0
        %1654 = vperm.xlu0 %1653, %v1632
        %v1655 = vpop.permute.xlu0 %1654
        %1658 = vset.pattern.permute.xlu0 0
        %1659 = vperm.xlu0 %1658, %v1633
        %v1660 = vpop.permute.xlu0 %1659
        %1662 = vset.pattern.permute.xlu0 0
        %1663 = vperm.xlu0 %1662, %v1634
        %v1664 = vpop.permute.xlu0 %1663
        %1666 = vset.pattern.permute.xlu0 0
        %1667 = vperm.xlu0 %1666, %v1635
        %v1668 = vpop.permute.xlu0 %1667
        %1670 = vset.pattern.permute.xlu0 0
        %1671 = vperm.xlu0 %1670, %v1636
        %v1672 = vpop.permute.xlu0 %1671
        %1674 = vset.pattern.permute.xlu0 0
        %1675 = vperm.xlu0 %1674, %v1637
        %v1676 = vpop.permute.xlu0 %1675
        %1678 = vset.pattern.permute.xlu0 0
        %1679 = vperm.xlu0 %1678, %v1638
        %v1680 = vpop.permute.xlu0 %1679
        %1682 = vset.pattern.permute.xlu0 0
        %1683 = vperm.xlu0 %1682, %v1639
        %v1684 = vpop.permute.xlu0 %1683
        %1686 = vset.pattern.permute.xlu0 0
        %1687 = vperm.xlu0 %1686, %v1640
        %v1688 = vpop.permute.xlu0 %1687
        %1690 = vset.pattern.permute.xlu0 0
        %1691 = vperm.xlu0 %1690, %v1641
        %v1692 = vpop.permute.xlu0 %1691
        %1694 = vset.pattern.permute.xlu0 0
        %1695 = vperm.xlu0 %1694, %v1642
        %v1696 = vpop.permute.xlu0 %1695
        %1698 = vset.pattern.permute.xlu0 0
        %1699 = vperm.xlu0 %1698, %v1643
        %v1700 = vpop.permute.xlu0 %1699
        %1702 = vset.pattern.permute.xlu0 0
        %1703 = vperm.xlu0 %1702, %v1644
        %v1704 = vpop.permute.xlu0 %1703
        %1706 = vset.pattern.permute.xlu0 0
        %1707 = vperm.xlu0 %1706, %v1645
        %v1708 = vpop.permute.xlu0 %1707
        %1710 = vset.pattern.permute.xlu0 0
        %1711 = vperm.xlu0 %1710, %v1646
        %v1712 = vpop.permute.xlu0 %1711
        %v1729 = vunpack.c.l.b16 %v1583
        %v1730 = vunpack.c.l.b16 %v1584
        %v1731 = vunpack.c.l.b16 %v1585
        %v1732 = vunpack.c.l.b16 %v1586
        %v1733 = vunpack.c.l.b16 %v1587
        %v1734 = vunpack.c.l.b16 %v1588
        %v1735 = vunpack.c.l.b16 %v1589
        %v1736 = vunpack.c.l.b16 %v1590
        %v1737 = vunpack.c.l.b16 %v1591
        %v1738 = vunpack.c.l.b16 %v1592
        %v1739 = vunpack.c.l.b16 %v1593
        %v1740 = vunpack.c.l.b16 %v1594
        %v1741 = vunpack.c.l.b16 %v1595
        %v1742 = vunpack.c.l.b16 %v1596
        %v1743 = vunpack.c.l.b16 %v1597
        %v1744 = vunpack.c.l.b16 %v1598
        %v1745 = vpack.c.b16 %v1730, %v1729
        %v1746 = vpack.c.b16 %v1732, %v1731
        %v1747 = vpack.c.b16 %v1734, %v1733
        %v1748 = vpack.c.b16 %v1736, %v1735
        %v1749 = vpack.c.b16 %v1738, %v1737
        %v1750 = vpack.c.b16 %v1740, %v1739
        %v1751 = vpack.c.b16 %v1742, %v1741
        %v1752 = vpack.c.b16 %v1744, %v1743
        %1761 = vmatprep.subr.bf16.mxu0 %v1628
        %1762 = vmatpush1.bf16.msra.mxu0 %v1627
        %1763 = vmatprep.subr.bf16.mxu0 %v1624
        %1764 = vmatpush1.bf16.msra.mxu0 %v1623
        %1765 = vmatprep.subr.bf16.mxu0 %v1620
        %1766 = vmatpush1.bf16.msra.mxu0 %v1619
        %1767 = vmatprep.subr.bf16.mxu0 %v1616
        %1768 = vmatpush1.bf16.msra.mxu0 %v1615
        %1769 = vmatprep.subr.bf16.mxu0 %v1612
        %1770 = vmatpush1.bf16.msra.mxu0 %v1611
        %1771 = vmatprep.subr.bf16.mxu0 %v1608
        %1772 = vmatpush1.bf16.msra.mxu0 %v1607
        %1773 = vmatprep.subr.bf16.mxu0 %v1604
        %1774 = vmatpush1.bf16.msra.mxu0 %v1603
        %1775 = vmatprep.subr.bf16.mxu0 %v1600
        %1776 = vmatpush1.bf16.msra.mxu0 %v1599
        %1777 = vmatprep.subr.bf16.mxu0 0
        %1778 = vmatpush2.bf16.msra.mxu0 0
        %1779 = vmatprep.subr.bf16.mxu0 0
        %1780 = vmatpush2.bf16.msra.mxu0 0
        %1781 = vmatprep.subr.bf16.mxu0 0
        %1782 = vmatpush2.bf16.msra.mxu0 0
        %1783 = vmatprep.subr.bf16.mxu0 0
        %1784 = vmatpush2.bf16.msra.mxu0 0
        %1785 = vmatprep.subr.bf16.mxu0 0
        %1786 = vmatpush2.bf16.msra.mxu0 0
        %1787 = vmatprep.subr.bf16.mxu0 0
        %1788 = vmatpush2.bf16.msra.mxu0 0
        %1789 = vmatprep.subr.bf16.mxu0 0
        %1790 = vmatpush2.bf16.msra.mxu0 0
        %1791 = vmatprep.subr.bf16.mxu0 0
        %1792 = vmatpush2.bf16.msra.mxu0 0
        %1793 = vmatprep.mubr.bf16.mxu0 0
        %1794 = vmatmul.mubr.bf16.gmra.mxu0 %v1745
        %v1795 = vpop.f32.mrf.mxu0
        %v1796 = vadd.f32 %v1650, %v1795
        %v1797 = vpop.f32.mrf.mxu0
        %v1798 = vadd.f32 %v1650, %v1797
        %v1799 = vpop.f32.mrf.mxu0
        %v1800 = vadd.f32 %v1655, %v1799
        %v1801 = vpop.f32.mrf.mxu0
        %v1802 = vadd.f32 %v1655, %v1801
        %1803 = vmatprep.mubr.bf16.mxu0 0
        %1804 = vmatmul.mubr.bf16.gmra.mxu0 %v1746
        %v1805 = vpop.f32.mrf.mxu0
        %v1806 = vpop.f32.mrf.mxu0
        %v1807 = vpop.f32.mrf.mxu0
        %v1808 = vpop.f32.mrf.mxu0
        %1809 = vmatprep.mubr.bf16.mxu0 0
        %1810 = vmatmul.mubr.bf16.gmra.mxu0 %v1747
        %v1811 = vpop.f32.mrf.mxu0
        %v1812 = vpop.f32.mrf.mxu0
        %v1813 = vpop.f32.mrf.mxu0
        %v1814 = vpop.f32.mrf.mxu0
        %1815 = vmatprep.mubr.bf16.mxu0 0
        %1816 = vmatmul.mubr.bf16.gmra.mxu0 %v1748
        %v1817 = vpop.f32.mrf.mxu0
        %v1818 = vpop.f32.mrf.mxu0
        %v1819 = vpop.f32.mrf.mxu0
        %v1820 = vpop.f32.mrf.mxu0
        %1821 = vmatprep.mubr.bf16.mxu0 0
        %1822 = vmatmul.mubr.bf16.gmra.mxu0 %v1749
        %v1823 = vpop.f32.mrf.mxu0
        %v1824 = vpop.f32.mrf.mxu0
        %v1825 = vpop.f32.mrf.mxu0
        %v1826 = vpop.f32.mrf.mxu0
        %1827 = vmatprep.mubr.bf16.mxu0 0
        %1828 = vmatmul.mubr.bf16.gmra.mxu0 %v1750
        %v1829 = vpop.f32.mrf.mxu0
        %v1830 = vpop.f32.mrf.mxu0
        %v1831 = vpop.f32.mrf.mxu0
        %v1832 = vpop.f32.mrf.mxu0
        %1833 = vmatprep.mubr.bf16.mxu0 0
        %1834 = vmatmul.mubr.bf16.gmra.mxu0 %v1751
        %v1835 = vpop.f32.mrf.mxu0
        %v1836 = vpop.f32.mrf.mxu0
        %v1837 = vpop.f32.mrf.mxu0
        %v1838 = vpop.f32.mrf.mxu0
        %1839 = vmatprep.mubr.bf16.mxu0 0
        %1840 = vmatmul.mubr.bf16.gmra.mxu0 %v1752
        %v1841 = vpop.f32.mrf.mxu0
        %v1842 = vpop.f32.mrf.mxu0
        %v1843 = vpop.f32.mrf.mxu0
        %v1844 = vpop.f32.mrf.mxu0
        %1845 = vdwg.mxu0
        %1846 = vmatprep.subr.bf16.mxu0 %v1630
        %1847 = vmatpush1.bf16.msra.mxu0 %v1629
        %1848 = vmatprep.subr.bf16.mxu0 %v1626
        %1849 = vmatpush1.bf16.msra.mxu0 %v1625
        %1850 = vmatprep.subr.bf16.mxu0 %v1622
        %1851 = vmatpush1.bf16.msra.mxu0 %v1621
        %1852 = vmatprep.subr.bf16.mxu0 %v1618
        %1853 = vmatpush1.bf16.msra.mxu0 %v1617
        %1854 = vmatprep.subr.bf16.mxu0 %v1614
        %1855 = vmatpush1.bf16.msra.mxu0 %v1613
        %1856 = vmatprep.subr.bf16.mxu0 %v1610
        %1857 = vmatpush1.bf16.msra.mxu0 %v1609
        %1858 = vmatprep.subr.bf16.mxu0 %v1606
        %1859 = vmatpush1.bf16.msra.mxu0 %v1605
        %1860 = vmatprep.subr.bf16.mxu0 %v1602
        %1861 = vmatpush1.bf16.msra.mxu0 %v1601
        %1862 = vmatprep.subr.bf16.mxu0 0
        %1863 = vmatpush2.bf16.msra.mxu0 0
        %1864 = vmatprep.subr.bf16.mxu0 0
        %1865 = vmatpush2.bf16.msra.mxu0 0
        %1866 = vmatprep.subr.bf16.mxu0 0
        %1867 = vmatpush2.bf16.msra.mxu0 0
        %1868 = vmatprep.subr.bf16.mxu0 0
        %1869 = vmatpush2.bf16.msra.mxu0 0
        %1870 = vmatprep.subr.bf16.mxu0 0
        %1871 = vmatpush2.bf16.msra.mxu0 0
        %1872 = vmatprep.subr.bf16.mxu0 0
        %1873 = vmatpush2.bf16.msra.mxu0 0
        %1874 = vmatprep.subr.bf16.mxu0 0
        %1875 = vmatpush2.bf16.msra.mxu0 0
        %1876 = vmatprep.subr.bf16.mxu0 0
        %1877 = vmatpush2.bf16.msra.mxu0 0
        %1878 = vmatprep.mubr.bf16.mxu0 0
        %1879 = vmatmul.mubr.bf16.gmra.mxu0 %v1745
        %v1880 = vpop.f32.mrf.mxu0
        %v1881 = vadd.f32 %v1650, %v1880
        %v1882 = vpop.f32.mrf.mxu0
        %v1883 = vadd.f32 %v1650, %v1882
        %v1884 = vpop.f32.mrf.mxu0
        %v1885 = vadd.f32 %v1655, %v1884
        %v1886 = vpop.f32.mrf.mxu0
        %v1887 = vadd.f32 %v1655, %v1886
        %1888 = vmatprep.mubr.bf16.mxu0 0
        %1889 = vmatmul.mubr.bf16.gmra.mxu0 %v1746
        %v1890 = vpop.f32.mrf.mxu0
        %v1891 = vpop.f32.mrf.mxu0
        %v1892 = vpop.f32.mrf.mxu0
        %v1893 = vpop.f32.mrf.mxu0
        %1894 = vmatprep.mubr.bf16.mxu0 0
        %1895 = vmatmul.mubr.bf16.gmra.mxu0 %v1747
        %v1896 = vpop.f32.mrf.mxu0
        %v1897 = vpop.f32.mrf.mxu0
        %v1898 = vpop.f32.mrf.mxu0
        %v1899 = vpop.f32.mrf.mxu0
        %1900 = vmatprep.mubr.bf16.mxu0 0
        %1901 = vmatmul.mubr.bf16.gmra.mxu0 %v1748
        %v1902 = vpop.f32.mrf.mxu0
        %v1903 = vpop.f32.mrf.mxu0
        %v1904 = vpop.f32.mrf.mxu0
        %v1905 = vpop.f32.mrf.mxu0
        %1906 = vmatprep.mubr.bf16.mxu0 0
        %1907 = vmatmul.mubr.bf16.gmra.mxu0 %v1749
        %v1908 = vpop.f32.mrf.mxu0
        %v1909 = vpop.f32.mrf.mxu0
        %v1910 = vpop.f32.mrf.mxu0
        %v1911 = vpop.f32.mrf.mxu0
        %1912 = vmatprep.mubr.bf16.mxu0 0
        %1913 = vmatmul.mubr.bf16.gmra.mxu0 %v1750
        %v1914 = vpop.f32.mrf.mxu0
        %v1915 = vpop.f32.mrf.mxu0
        %v1916 = vpop.f32.mrf.mxu0
        %v1917 = vpop.f32.mrf.mxu0
        %1918 = vmatprep.mubr.bf16.mxu0 0
        %1919 = vmatmul.mubr.bf16.gmra.mxu0 %v1751
        %v1920 = vpop.f32.mrf.mxu0
        %v1921 = vpop.f32.mrf.mxu0
        %v1922 = vpop.f32.mrf.mxu0
        %v1923 = vpop.f32.mrf.mxu0
        %1924 = vmatprep.mubr.bf16.mxu0 0
        %1925 = vmatmul.mubr.bf16.gmra.mxu0 %v1752
        %v1926 = vpop.f32.mrf.mxu0
        %v1927 = vpop.f32.mrf.mxu0
        %v1928 = vpop.f32.mrf.mxu0
        %v1929 = vpop.f32.mrf.mxu0
        %1930 = vdwg.mxu0
        %v1931 = vmax.f32 %v1796, 0.0
        %v1932 = vmax.f32 %v1798, 0.0
        %v1933 = vmax.f32 %v1881, 0.0
        %v1934 = vmax.f32 %v1883, 0.0
        %v1935 = vmax.f32 %v1800, 0.0
        %v1936 = vmax.f32 %v1802, 0.0
        %v1937 = vmax.f32 %v1885, 0.0
        %v1938 = vmax.f32 %v1887, 0.0
        %v1939 = vadd.f32 %v1931, %v1519
        %v1940 = vadd.f32 %v1932, %v1520
        %v1941 = vadd.f32 %v1933, %v1521
        %v1942 = vadd.f32 %v1934, %v1522
        %v1943 = vadd.f32 %v1935, %v1523
        %v1944 = vadd.f32 %v1936, %v1524
        %v1945 = vadd.f32 %v1937, %v1525
        %v1946 = vadd.f32 %v1938, %v1526
        %v1947 = vpack.c.bf16 %v1943, %v1939
        %v1948 = vpack.c.bf16 %v1944, %v1940
        %v1949 = vpack.c.bf16 %v1945, %v1941
        %v1950 = vpack.c.bf16 %v1946, %v1942
        %v1955 = vunpack.c.l.b16 %v1947
        %v1956 = vunpack.c.l.b16 %v1948
        %v1957 = vunpack.c.l.b16 %v1949
        %v1958 = vunpack.c.l.b16 %v1950
        %v1959 = vunpack.c.h.b16 %v1947
        %v1960 = vunpack.c.h.b16 %v1948
        %v1961 = vunpack.c.h.b16 %v1949
        %v1962 = vunpack.c.h.b16 %v1950
        %v1963 = vpack.c.b16 %v1956, %v1955
        %v1964 = vpack.c.b16 %v1958, %v1957
        %v1965 = vpack.c.b16 %v1960, %v1959
        %v1966 = vpack.c.b16 %v1962, %v1961
        %1971 = vst [vmem:[%s268] sm:$0xff] %v1963
        %1972 = vst [vmem:[%s268 + $0x8] sm:$0xff] %v1964
        %1973 = vst [vmem:[%s268 + $0x10] sm:$0xff] %v1965
        %1974 = vst [vmem:[%s268 + $0x18] sm:$0xff] %v1966
        %s1975 = sand.u32 %s178, 1
        %s1976 = sand.u32 %s178, 1
        %s1977 = smul.addr %s1976, 32
        %s1978 = scalar_lea.vmem [#allocation2], %s1977
        // Predicated region
        $region49: #{deepcat_ad_forward.1} parent=47 // pred_check
          %p1979 = pneg %p188
        $region50: #{deepcat_ad_forward.1} parent=47 // pred_check_branch
          %1981 = sbr.rel (%p1979) target = $region52
        $region51: #{deepcat_ad_forward.1} parent=47 // pred_region
          %s1982 = smul.u32 4, %s18
          %s1983 = smul.addr %s1982, 4
          %s1984 = scalar_lea.vmem %s7, %s1983
          // Predicated region
          $region53: #{deepcat_ad_forward.1} parent=51 // pred_check
            _
          $region54: #{deepcat_ad_forward.1} parent=51 // pred_check_branch
            %1986 = sbr.rel (0) target = $region56
          $region55: #{deepcat_ad_forward.1} parent=51 // pred_region
            // Predicated region
            $region57: #{deepcat_ad_forward.1} parent=55 // pred_check
              _
            $region58: #{deepcat_ad_forward.1} parent=55 // pred_check_branch
              %1988 = sbr.rel (0) target = $region60
            $region59: #{deepcat_ad_forward.1} parent=55 // pred_region
              loop: start=0, step=1, limit=1
              $region61: #{deepcat_ad_forward.1} parent=59 // loop_pre_header
                _
              $region62: #{deepcat_ad_forward.1} parent=59 // loop_header
                %s1990 = sphi 0, %s1994
                %p1991 = scmp.ge.s32.totalorder %s1990, 1
                %s1995 = sphi %s1978, %s1978
                %s1996 = sphi %s1984, %s1984
              $region63: #{deepcat_ad_forward.1} parent=59 // loop_header_branch
                %1993 = sbr.rel (%p1991) target = $region67
              $region64: #{deepcat_ad_forward.1} parent=59 // loop_body
                %v1997 = vld [vmem:[%s1995] sm:$0xff]
                %1998 = vst [vmem:[%s1996] sm:$0xff] %v1997
                %v1999 = vld [vmem:[%s1995 + $0x8] sm:$0xff]
                %2000 = vst [vmem:[%s1996 + $0x8] sm:$0xff] %v1999
                %v2001 = vld [vmem:[%s1995 + $0x10] sm:$0xff]
                %2002 = vst [vmem:[%s1996 + $0x40] sm:$0xff] %v2001
                %v2003 = vld [vmem:[%s1995 + $0x18] sm:$0xff]
                %2004 = vst [vmem:[%s1996 + $0x48] sm:$0xff] %v2003
              $region65: #{deepcat_ad_forward.1} parent=59 // loop_footer
                %s1994 = sadd.s32 1, %s1990
              $region66: #{deepcat_ad_forward.1} parent=59 // loop_footer_branch
                %1989 = sbr.rel target = $region62
              $region67: #{deepcat_ad_forward.1} parent=59 // loop_exit
                _
            $region60: #{deepcat_ad_forward.1} parent=55 // pred_fallthru
              _
            // Predicated region
            $region68: #{deepcat_ad_forward.1} parent=55 // pred_check
              _
            $region69: #{deepcat_ad_forward.1} parent=55 // pred_check_branch
              %2006 = sbr.rel target = $region71
            $region70: #{deepcat_ad_forward.1} parent=55 // pred_region
              _
            $region71: #{deepcat_ad_forward.1} parent=55 // pred_fallthru
              _
          $region56: #{deepcat_ad_forward.1} parent=51 // pred_fallthru
            _
          %2007 = vnop
        $region52: #{deepcat_ad_forward.1} parent=47 // pred_fallthru
          _
      $region48: #{deepcat_ad_forward.1} parent=5 // pred_fallthru
        _
      %p2008 = scmp.le.s32.totalorder 2, %s13
      // Predicated region
      $region72: #{deepcat_ad_forward.1} parent=5 // pred_check
        %p2009 = pneg %p2008
      $region73: #{deepcat_ad_forward.1} parent=5 // pred_check_branch
        %2011 = sbr.rel (%p2009) target = $region75
      $region74: #{deepcat_ad_forward.1} parent=5 // pred_region
        %s2012 = ssub.s32 %s13, 2
        // Predicated region
        $region76: #{deepcat_ad_forward.1} parent=74 // pred_check
          %p2013 = pneg %p194
        $region77: #{deepcat_ad_forward.1} parent=74 // pred_check_branch
          %2015 = sbr.rel (%p2013) target = $region79
        $region78: #{deepcat_ad_forward.1} parent=74 // pred_region
          %s2016 = sand.u32 %s179, 1
          %s2017 = sand.u32 %s179, 1
          %s2018 = smul.addr %s2017, 32
          %s2019 = scalar_lea.vmem [#allocation2], %s2018
        $region79: #{deepcat_ad_forward.1} parent=74 // pred_fallthru
          _
      $region75: #{deepcat_ad_forward.1} parent=5 // pred_fallthru
        _
    $region6: #{deepcat_ad_forward.1} parent=1 // loop_footer
      %s17 = sadd.s32 1, %s13
    $region7: #{deepcat_ad_forward.1} parent=1 // loop_footer_branch
      %12 = sbr.rel target = $region3
    $region8: #{deepcat_ad_forward.1} parent=1 // loop_exit
      _

</llo_original>
